<compile_context>
chip_gen: v5e
topology: v5e:2x2
jax: 0.10.0
libtpu: 0.0.40
codegen_flags: <defaults>
</compile_context>

<pallas_src>
import functools

import jax
import jax.numpy as jnp
from jax import lax
from jax.experimental import pallas as pl
from jax.experimental.pallas import tpu as pltpu


_MASK_VALUE = -1e30                      # large-negative (not -inf) => no NaN from inf-inf
_FAST_PATH_BUDGET = 24 * 1024 * 1024     # fast-path VMEM budget safe on v5e/v6e/v7x


def _round_up(x, m):
    return ((x + m - 1) // m) * m


# =============================================================================
# Fast path: whole per-batch problem in a single kernel (exact softmax).
# =============================================================================
def _fused_small_kernel(gamma_ref, x_ref,
                        wpT_ref, bp_ref, wqT_ref, bq_ref,
                        wk_ref, bk_ref, wvT_ref, bv_ref,
                        o_ref):
    x = x_ref[0]                                                         # (Cin, N)
    xp = jnp.maximum(
        jnp.dot(wpT_ref[...], x, preferred_element_type=jnp.float32)
        + bp_ref[...], 0.0)                                              # (C, N)
    q = (jnp.dot(wqT_ref[...], xp, preferred_element_type=jnp.float32)
         + bq_ref[...])                                                  # (C8, N)
    v = (jnp.dot(wvT_ref[...], xp, preferred_element_type=jnp.float32)
         + bv_ref[...])                                                  # (C, N)
    kT = (jnp.dot(xp.T, wk_ref[...], preferred_element_type=jnp.float32)
          + bk_ref[...])                                                 # (N, C8)

    # s[m, n] = <k[:, m], q[:, n]> == energy[n, m]; softmax over keys m (axis 0)
    s = jnp.dot(kT, q, preferred_element_type=jnp.float32)               # (N, N)
    m = jnp.max(s, axis=0, keepdims=True)
    p = jnp.exp(s - m)
    l = jnp.sum(p, axis=0, keepdims=True)
    out = jnp.dot(v, p, preferred_element_type=jnp.float32)              # (C, N)
    scale = gamma_ref[0] / l               # gamma folded into the exact normalization
    o_ref[0] = ((out * scale) * xp).astype(o_ref.dtype)


# =============================================================================
# Flash path, stage 1: hoisted projections (run once per column tile).
# =============================================================================
def _project_kernel(x_ref,
                    wpT_ref, bp_ref, wqT_ref, bq_ref,
                    wk_ref, bk_ref, wvT_ref, bv_ref,
                    xp_ref, q_ref, kT_ref, v_ref):
    x = x_ref[0]                                                         # (Cin, T)
    xp = jnp.maximum(
        jnp.dot(wpT_ref[...], x, preferred_element_type=jnp.float32)
        + bp_ref[...], 0.0)                                              # (C, T)
    xp_ref[0] = xp.astype(xp_ref.dtype)
    q_ref[0] = (jnp.dot(wqT_ref[...], xp, preferred_element_type=jnp.float32)
                + bq_ref[...]).astype(q_ref.dtype)                       # (C8, T)
    v_ref[0] = (jnp.dot(wvT_ref[...], xp, preferred_element_type=jnp.float32)
                + bv_ref[...]).astype(v_ref.dtype)                       # (C, T)
    # kT is produced token-major (T, C8) here, so the flash hot loop needs no
    # per-step transposes at all (the (C, T) transpose is hoisted & amortized).
    kT_ref[0] = (jnp.dot(xp.T, wk_ref[...], preferred_element_type=jnp.float32)
                 + bk_ref[...]).astype(kT_ref.dtype)                     # (T, C8)


# =============================================================================
# Flash path, stage 2: online-softmax attention + fused gamma*out*xp epilogue.
# =============================================================================
def _flash_attention_kernel(gamma_ref, q_ref, xpq_ref, kT_ref, v_ref, o_ref,
                            m_s, l_s, acc_s,
                            *, tile, n_valid, n_pad, use_bf16):
    ki = pl.program_id(2)
    nk = pl.num_programs(2)

    @pl.when(ki == 0)
    def _init():
        m_s[...] = jnp.full_like(m_s, -jnp.inf)
        l_s[...] = jnp.zeros_like(l_s)
        acc_s[...] = jnp.zeros_like(acc_s)

    q = q_ref[0]                                                         # (C8, TQ)
    kT = kT_ref[0]                                                       # (TK, C8)
    v = v_ref[0]                                                         # (C, TK)
    if use_bf16:          # bf16 MXU operands, f32 accumulation & f32 softmax math
        q = q.astype(jnp.bfloat16)
        kT = kT.astype(jnp.bfloat16)
        v = v.astype(jnp.bfloat16)
    s = jnp.dot(kT, q, preferred_element_type=jnp.float32)               # (TK, TQ)

    if n_pad != n_valid:  # static branch: masking only emitted when padding exists
        key_idx = ki * tile + lax.broadcasted_iota(jnp.int32, (tile, 1), 0)
        s = jnp.where(key_idx < n_valid, s, _MASK_VALUE)

    m_prev = m_s[...]
    m_new = jnp.maximum(m_prev, jnp.max(s, axis=0, keepdims=True))       # (1, TQ)
    alpha = jnp.exp(m_prev - m_new)
    p = jnp.exp(s - m_new)                                               # (TK, TQ)
    l_s[...] = alpha * l_s[...] + jnp.sum(p, axis=0, keepdims=True)
    pv = jnp.dot(v, p.astype(v.dtype), preferred_element_type=jnp.float32)
    acc_s[...] = alpha * acc_s[...] + pv
    m_s[...] = m_new

    @pl.when(ki == nk - 1)
    def _finalize():
        scale = gamma_ref[0] / l_s[...]    # exact divide, gamma folded in (once/tile)
        o_ref[0] = ((acc_s[...] * scale) * xpq_ref[0]).astype(o_ref.dtype)


# =============================================================================
# VMEM accounting + tile selection
# =============================================================================
def _fast_path_vmem_bytes(cin, c, c8, n):
    f32 = 4
    io = 2 * f32 * (cin + c) * n                                  # x in + out, double-buffered
    weights = 2 * f32 * (c * cin + 2 * c8 * c + c * c + 4 * c)
    temps = f32 * (3 * n * n + 8 * c * n)                         # s, p + projections / copies
    return int(2 * (io + weights + temps))                        # 2x headroom


def _proj_vmem_bytes(cin, c, c8, tile):
    f32 = 4
    lane = 128                                                    # (tile, C8) block pads to 128 lanes
    io = 2 * f32 * tile * (cin + 2 * c + c8 + lane)
    weights = 2 * f32 * (c * cin + 2 * c8 * c + c * c + 4 * c)
    temps = f32 * (6 * c * tile)
    return int(max(16 * 1024 * 1024, 2 * (io + weights + temps)))


def _flash_vmem_bytes(c, c8, tile):
    f32 = 4
    lane = 128
    io = 2 * f32 * tile * (3 * c + c8 + lane)                     # q, xp, v, out + lane-padded kT
    scratch = f32 * tile * (c + 2)
    temps = f32 * (4 * tile * tile + 6 * c * tile)                # s, p (+bf16 copies), pv
    return int(max(16 * 1024 * 1024, 2 * (io + scratch + temps)))


def _default_tile():
    # 512-wide tiles keep the (tile, tile) f32 score temps well inside every
    # generation's VMEM (v7x: 64 MiB physical / 32 MiB default-scoped), reach
    # ~85% of the measured HBM roofline, and fill the 256-wide MXU on v6e/v7x.
    try:
        vmem = pltpu.get_tpu_info().vmem_capacity_bytes
    except Exception:
        vmem = 64 * 1024 * 1024
    return 512 if vmem >= 48 * 1024 * 1024 else 256


# =============================================================================
# Wrappers
# =============================================================================
def _run_fast_path(x_cm, p):
    B, Cin, N = x_cm.shape
    C = p["wpT"].shape[0]
    C8 = p["wqT"].shape[0]
    return pl.pallas_call(
        _fused_small_kernel,
        out_shape=jax.ShapeDtypeStruct((B, C, N), x_cm.dtype),
        grid=(B,),
        in_specs=[
            pl.BlockSpec(memory_space=pltpu.MemorySpace.SMEM),            # gamma
            pl.BlockSpec((1, Cin, N), lambda b: (b, 0, 0)),               # x
            pl.BlockSpec((C, Cin), lambda b: (0, 0)),                     # wpT
            pl.BlockSpec((C, 1), lambda b: (0, 0)),                       # bp
            pl.BlockSpec((C8, C), lambda b: (0, 0)),                      # wqT
            pl.BlockSpec((C8, 1), lambda b: (0, 0)),                      # bq
            pl.BlockSpec((C, C8), lambda b: (0, 0)),                      # wk
            pl.BlockSpec((1, C8), lambda b: (0, 0)),                      # bk
            pl.BlockSpec((C, C), lambda b: (0, 0)),                       # wvT
            pl.BlockSpec((C, 1), lambda b: (0, 0)),                       # bv
        ],
        out_specs=pl.BlockSpec((1, C, N), lambda b: (b, 0, 0)),
        compiler_params=pltpu.CompilerParams(
            dimension_semantics=("parallel",),
            vmem_limit_bytes=int(max(16 * 1024 * 1024,
                                     _fast_path_vmem_bytes(Cin, C, C8, N))),
        ),
    )(p["gamma"], x_cm, p["wpT"], p["bp"], p["wqT"], p["bq"],
      p["wk"], p["bk"], p["wvT"], p["bv"])


def _run_flash_path(x_cm, p, *, tile, n_valid, use_bf16):
    B, Cin, Npad = x_cm.shape
    C = p["wpT"].shape[0]
    C8 = p["wqT"].shape[0]
    f32 = jnp.float32
    nt = Npad // tile

    # ---- stage 1: hoisted projections, channel-major / lane-dense outputs ----
    xp, q, kT, v = pl.pallas_call(
        _project_kernel,
        out_shape=(jax.ShapeDtypeStruct((B, C, Npad), f32),
                   jax.ShapeDtypeStruct((B, C8, Npad), f32),
                   jax.ShapeDtypeStruct((B, Npad, C8), f32),
                   jax.ShapeDtypeStruct((B, C, Npad), f32)),
        grid=(B, nt),
        in_specs=[
            pl.BlockSpec((1, Cin, tile), lambda b, i: (b, 0, i)),
            pl.BlockSpec((C, Cin), lambda b, i: (0, 0)),
            pl.BlockSpec((C, 1), lambda b, i: (0, 0)),
            pl.BlockSpec((C8, C), lambda b, i: (0, 0)),
            pl.BlockSpec((C8, 1), lambda b, i: (0, 0)),
            pl.BlockSpec((C, C8), lambda b, i: (0, 0)),
            pl.BlockSpec((1, C8), lambda b, i: (0, 0)),
            pl.BlockSpec((C, C), lambda b, i: (0, 0)),
            pl.BlockSpec((C, 1), lambda b, i: (0, 0)),
        ],
        out_specs=(
            pl.BlockSpec((1, C, tile), lambda b, i: (b, 0, i)),
            pl.BlockSpec((1, C8, tile), lambda b, i: (b, 0, i)),
            pl.BlockSpec((1, tile, C8), lambda b, i: (b, i, 0)),
            pl.BlockSpec((1, C, tile), lambda b, i: (b, 0, i)),
        ),
        compiler_params=pltpu.CompilerParams(
            dimension_semantics=("parallel", "parallel"),
            vmem_limit_bytes=_proj_vmem_bytes(Cin, C, C8, tile),
        ),
    )(x_cm, p["wpT"], p["bp"], p["wqT"], p["bq"],
      p["wk"], p["bk"], p["wvT"], p["bv"])

    # ---- stage 2: flash attention over the precomputed q / kT / v ----
    kernel = functools.partial(
        _flash_attention_kernel, tile=tile, n_valid=n_valid, n_pad=Npad,
        use_bf16=use_bf16)
    return pl.pallas_call(
        kernel,
        out_shape=jax.ShapeDtypeStruct((B, C, Npad), x_cm.dtype),
        grid=(B, nt, nt),
        in_specs=[
            pl.BlockSpec(memory_space=pltpu.MemorySpace.SMEM),                  # gamma
            pl.BlockSpec((1, C8, tile), lambda b, qi, ki: (b, 0, qi)),          # q (query tile)
            pl.BlockSpec((1, C, tile), lambda b, qi, ki: (b, 0, qi)),           # xp (query tile)
            pl.BlockSpec((1, tile, C8), lambda b, qi, ki: (b, ki, 0)),          # kT (key block)
            pl.BlockSpec((1, C, tile), lambda b, qi, ki: (b, 0, ki)),           # v (key block)
        ],
        out_specs=pl.BlockSpec((1, C, tile), lambda b, qi, ki: (b, 0, qi)),
        scratch_shapes=[
            pltpu.VMEM((1, tile), jnp.float32),     # running max
            pltpu.VMEM((1, tile), jnp.float32),     # running sum
            pltpu.VMEM((C, tile), jnp.float32),     # output accumulator
        ],
        compiler_params=pltpu.CompilerParams(
            dimension_semantics=("parallel", "parallel", "arbitrary"),
            vmem_limit_bytes=_flash_vmem_bytes(C, C8, tile),
        ),
    )(p["gamma"], q, xp, kT, v)


def self_attention_forward(x_nchw, params, *, tile=None, force_flash=False,
                           use_bf16=True):
    """gamma * (value @ softmax(query^T key)^T) * channel_proj(x), NCHW in/out."""
    B, Cin, H, W = x_nchw.shape
    N = H * W
    C = params["wpT"].shape[0]
    C8 = params["wqT"].shape[0]

    # NCHW is already channel-major (B, C, H*W): no wrapper transposes needed.
    x_cm = x_nchw.reshape(B, Cin, N)

    # Small problems: one fused block per batch element (exact softmax, no grid
    # machinery).  Note: batch (=2 in the test) gives both v7x TensorCores work.
    if (not force_flash) and _fast_path_vmem_bytes(Cin, C, C8, N) <= _FAST_PATH_BUDGET:
        out = _run_fast_path(x_cm, params)
        return out.reshape(B, C, H, W)

    # Large problems: flash tiling.  Pad N up to a tile multiple (padded keys are
    # masked in-kernel, padded query columns sliced off) so no full-extent
    # fallback ever materializes O(N^2) score temps in VMEM.
    if tile is None:
        tile = _default_tile()
    tile = min(_round_up(max(int(tile), 128), 128), _round_up(N, 128))
    n_pad = _round_up(N, tile)
    if n_pad != N:
        x_cm = jnp.pad(x_cm, ((0, 0), (0, 0), (0, n_pad - N)))
    out = _run_flash_path(x_cm, params, tile=tile, n_valid=N, use_bf16=use_bf16)
    return out[:, :, :N].reshape(B, C, H, W)


# =============================================================================
# Parameters (PyTorch-equivalent, BN folded) and pure-JAX reference
# =============================================================================
def init_params(key, in_channels, out_channels):
    C, C8 = out_channels, out_channels // 8
    ks = jax.random.split(key, 12)
    f32 = jnp.float32

    def w(k, cout, cin):
        # PyTorch Conv2d weight layout (Cout, Cin, 1, 1), squeezed to (Cout, Cin)
        return (0.1 * jax.random.normal(k, (cout, cin))).astype(f32)

    wp = w(ks[0], C, in_channels)                                         # (C, Cin)
    bp = (0.1 * jax.random.normal(ks[1], (C,))).astype(f32)

    # BatchNorm2d (inference) params, folded into channel_proj conv
    bn_g = (1.0 + 0.1 * jax.random.normal(ks[2], (C,))).astype(f32)
    bn_b = (0.1 * jax.random.normal(ks[3], (C,))).astype(f32)
    bn_mean = (0.1 * jax.random.normal(ks[4], (C,))).astype(f32)
    bn_var = jnp.abs(1.0 + 0.1 * jax.random.normal(ks[5], (C,))).astype(f32)
    scale = bn_g / jnp.sqrt(bn_var + 1e-5)
    wpT_eff = wp * scale[:, None]                                         # (C, Cin)
    bp_eff = (bp - bn_mean) * scale + bn_b

    wq = w(ks[6], C8, C)                                                  # (C8, C)
    bq = (0.1 * jax.random.normal(ks[7], (C8,))).astype(f32)
    wk = w(ks[8], C8, C)                                                  # (C8, C)
    bk = (0.1 * jax.random.normal(ks[9], (C8,))).astype(f32)
    wv = w(ks[10], C, C)                                                  # (C, C)
    bv = (0.1 * jax.random.normal(ks[11], (C,))).astype(f32)

    return {
        "wpT": wpT_eff, "bp": bp_eff.reshape(C, 1),
        "wqT": wq, "bq": bq.reshape(C8, 1),
        "wk": wk.T, "bk": bk.reshape(1, C8),     # (C, C8): produces token-major kT
        "wvT": wv, "bv": bv.reshape(C, 1),
        # PyTorch inits gamma to 0; use a nonzero deterministic value so the
        # attention compute is observable in the output.
        "gamma": jnp.array([0.5], dtype=f32),
    }


def reference_forward(x_nchw, p):
    # pure-JAX reference of the same math (for correctness check)
    B, Cin, H, W = x_nchw.shape
    N = H * W
    x = x_nchw.reshape(B, Cin, N).astype(jnp.float32)                    # channel-major
    xp = jnp.maximum(jnp.einsum("ci,bin->bcn", p["wpT"], x) + p["bp"][None, :, :], 0.0)
    q = jnp.einsum("jc,bcn->bjn", p["wqT"], xp) + p["bq"][None, :, :]    # (B, C8, N)
    k = jnp.einsum("cj,bcn->bjn", p["wk"], xp) + p["bk"].reshape(1, -1, 1)
    v = jnp.einsum("oc,bcn->bon", p["wvT"], xp) + p["bv"][None, :, :]
    energy = jnp.einsum("bjn,bjm->bnm", q, k)     # == torch.bmm(query, key)
    att = jax.nn.softmax(energy, axis=-1)
    out = jnp.einsum("bcm,bnm->bcn", v, att)      # == torch.bmm(value, att^T)
    res = p["gamma"][0] * out * xp
    return res.reshape(B, -1, H, W)


if __name__ == "__main__":
    B, IN_C, OUT_C, H, W = 2, 4, 32, 16, 16
    key = jax.random.PRNGKey(0)
    kx, kp = jax.random.split(key)
    x = jax.random.normal(kx, (B, IN_C, H, W), dtype=jnp.float32)
    params = init_params(kp, IN_C, OUT_C)
    y_ref = reference_forward(x, params)

    # 1) fast path (single fused block per batch element, exact f32 softmax)
    y = jax.block_until_ready(self_attention_forward(x, params))
    assert y.shape == (B, OUT_C, H, W)
    assert jnp.allclose(y, y_ref, atol=1e-3, rtol=1e-3), "fast path mismatch"

    # 2) flash path (hoisted projections + online softmax, bf16 MXU operands)
    y2 = jax.block_until_ready(
        self_attention_forward(x, params, force_flash=True, tile=128))
    assert jnp.allclose(y2, y_ref, atol=2e-2, rtol=2e-2), "flash path mismatch"

    # 3) flash path with N not a multiple of the tile (padding + key masking)
    H2, W2 = 10, 13
    x2 = jax.random.normal(jax.random.PRNGKey(1), (B, IN_C, H2, W2), dtype=jnp.float32)
    y3 = jax.block_until_ready(
        self_attention_forward(x2, params, force_flash=True, tile=128))
    y3_ref = reference_forward(x2, params)
    assert y3.shape == (B, OUT_C, H2, W2)
    assert jnp.allclose(y3, y3_ref, atol=2e-2, rtol=2e-2), "padded flash mismatch"

    print("KERNEL_OK")
</pallas_src>

<mosaic_0001>
module attributes {stable_mosaic.version = 11 : i64} {
  func.func @_fused_small_kernel(%arg0: i32, %arg1: memref<1xf32, #tpu.memory_space<smem>>, %arg2: memref<1x4x256xf32, #tpu.memory_space<vmem>>, %arg3: memref<32x4xf32, #tpu.memory_space<vmem>>, %arg4: memref<32x1xf32, #tpu.memory_space<vmem>>, %arg5: memref<4x32xf32, #tpu.memory_space<vmem>>, %arg6: memref<4x1xf32, #tpu.memory_space<vmem>>, %arg7: memref<32x4xf32, #tpu.memory_space<vmem>>, %arg8: memref<1x4xf32, #tpu.memory_space<vmem>>, %arg9: memref<32x32xf32, #tpu.memory_space<vmem>>, %arg10: memref<32x1xf32, #tpu.memory_space<vmem>>, %arg11: memref<1x32x256xf32, #tpu.memory_space<vmem>>) attributes {dimension_semantics = [#tpu.dimension_semantics<parallel>], iteration_bounds = array<i64: 2>, scalar_prefetch = 0 : i64, scratch_operands = 0 : i64, tpu.core_type = #tpu.core_type<tc>, window_params = [{transform_indices = @transform_0, window_bounds = array<i64: 1>}, {transform_indices = @transform_1, window_bounds = array<i64: 1, 4, 256>}, {pipeline_mode = #tpu.pipeline_mode<synchronous>, transform_indices = @transform_2, window_bounds = array<i64: 32, 4>}, {pipeline_mode = #tpu.pipeline_mode<synchronous>, transform_indices = @transform_3, window_bounds = array<i64: 32, 1>}, {pipeline_mode = #tpu.pipeline_mode<synchronous>, transform_indices = @transform_4, window_bounds = array<i64: 4, 32>}, {pipeline_mode = #tpu.pipeline_mode<synchronous>, transform_indices = @transform_5, window_bounds = array<i64: 4, 1>}, {pipeline_mode = #tpu.pipeline_mode<synchronous>, transform_indices = @transform_6, window_bounds = array<i64: 32, 4>}, {pipeline_mode = #tpu.pipeline_mode<synchronous>, transform_indices = @transform_7, window_bounds = array<i64: 1, 4>}, {pipeline_mode = #tpu.pipeline_mode<synchronous>, transform_indices = @transform_8, window_bounds = array<i64: 32, 32>}, {pipeline_mode = #tpu.pipeline_mode<synchronous>, transform_indices = @transform_9, window_bounds = array<i64: 32, 1>}, {transform_indices = @transform_10, window_bounds = array<i64: 1, 32, 256>}]} {
    %c0 = arith.constant 0 : index
    %c0_0 = arith.constant 0 : index
    %c0_1 = arith.constant 0 : index
    %0 = vector.load %arg2[%c0, %c0_0, %c0_1] : memref<1x4x256xf32, #tpu.memory_space<vmem>>, vector<1x4x256xf32>
    %1 = vector.shape_cast %0 : vector<1x4x256xf32> to vector<4x256xf32>
    %c0_2 = arith.constant 0 : index
    %c0_3 = arith.constant 0 : index
    %2 = vector.load %arg3[%c0_2, %c0_3] : memref<32x4xf32, #tpu.memory_space<vmem>>, vector<32x4xf32>
    %cst = arith.constant dense<0.000000e+00> : vector<32x256xf32>
    %3 = tpu.matmul %2, %1, %cst {dimension_numbers = #tpu.dot_dimension_numbers<[1], [0], [0], [1], [0, 0, 1, 1], [], []>} : vector<32x4xf32>, vector<4x256xf32>, vector<32x256xf32> -> vector<32x256xf32>
    %c0_4 = arith.constant 0 : index
    %c0_5 = arith.constant 0 : index
    %4 = vector.load %arg4[%c0_4, %c0_5] : memref<32x1xf32, #tpu.memory_space<vmem>>, vector<32x1xf32>
    %5 = vector.broadcast %4 : vector<32x1xf32> to vector<32x256xf32>
    %6 = arith.addf %3, %5 : vector<32x256xf32>
    %cst_6 = arith.constant 0.000000e+00 : f32
    %7 = vector.broadcast %cst_6 : f32 to vector<32x256xf32>
    %8 = arith.maximumf %6, %7 : vector<32x256xf32>
    %c0_7 = arith.constant 0 : index
    %c0_8 = arith.constant 0 : index
    %9 = vector.load %arg5[%c0_7, %c0_8] : memref<4x32xf32, #tpu.memory_space<vmem>>, vector<4x32xf32>
    %cst_9 = arith.constant dense<0.000000e+00> : vector<4x256xf32>
    %10 = tpu.matmul %9, %8, %cst_9 {dimension_numbers = #tpu.dot_dimension_numbers<[1], [0], [0], [1], [0, 0, 1, 1], [], []>} : vector<4x32xf32>, vector<32x256xf32>, vector<4x256xf32> -> vector<4x256xf32>
    %c0_10 = arith.constant 0 : index
    %c0_11 = arith.constant 0 : index
    %11 = vector.load %arg6[%c0_10, %c0_11] : memref<4x1xf32, #tpu.memory_space<vmem>>, vector<4x1xf32>
    %12 = vector.broadcast %11 : vector<4x1xf32> to vector<4x256xf32>
    %13 = arith.addf %10, %12 : vector<4x256xf32>
    %c0_12 = arith.constant 0 : index
    %c0_13 = arith.constant 0 : index
    %14 = vector.load %arg9[%c0_12, %c0_13] : memref<32x32xf32, #tpu.memory_space<vmem>>, vector<32x32xf32>
    %cst_14 = arith.constant dense<0.000000e+00> : vector<32x256xf32>
    %15 = tpu.matmul %14, %8, %cst_14 {dimension_numbers = #tpu.dot_dimension_numbers<[1], [0], [0], [1], [0, 0, 1, 1], [], []>} : vector<32x32xf32>, vector<32x256xf32>, vector<32x256xf32> -> vector<32x256xf32>
    %c0_15 = arith.constant 0 : index
    %c0_16 = arith.constant 0 : index
    %16 = vector.load %arg10[%c0_15, %c0_16] : memref<32x1xf32, #tpu.memory_space<vmem>>, vector<32x1xf32>
    %17 = vector.broadcast %16 : vector<32x1xf32> to vector<32x256xf32>
    %18 = arith.addf %15, %17 : vector<32x256xf32>
    %19 = tpu.transpose %8, [1, 0] : vector<32x256xf32> -> vector<256x32xf32>
    %c0_17 = arith.constant 0 : index
    %c0_18 = arith.constant 0 : index
    %20 = vector.load %arg7[%c0_17, %c0_18] : memref<32x4xf32, #tpu.memory_space<vmem>>, vector<32x4xf32>
    %cst_19 = arith.constant dense<0.000000e+00> : vector<256x4xf32>
    %21 = tpu.matmul %19, %20, %cst_19 {dimension_numbers = #tpu.dot_dimension_numbers<[1], [0], [0], [1], [0, 0, 1, 1], [], []>} : vector<256x32xf32>, vector<32x4xf32>, vector<256x4xf32> -> vector<256x4xf32>
    %c0_20 = arith.constant 0 : index
    %c0_21 = arith.constant 0 : index
    %22 = vector.load %arg8[%c0_20, %c0_21] : memref<1x4xf32, #tpu.memory_space<vmem>>, vector<1x4xf32>
    %23 = vector.broadcast %22 : vector<1x4xf32> to vector<256x4xf32>
    %24 = arith.addf %21, %23 : vector<256x4xf32>
    %cst_22 = arith.constant dense<0.000000e+00> : vector<256x256xf32>
    %25 = tpu.matmul %24, %13, %cst_22 {dimension_numbers = #tpu.dot_dimension_numbers<[1], [0], [0], [1], [0, 0, 1, 1], [], []>} : vector<256x4xf32>, vector<4x256xf32>, vector<256x256xf32> -> vector<256x256xf32>
    %cst_23 = arith.constant dense<0xFF800000> : vector<256xf32>
    %26 = vector.multi_reduction <maximumf>, %25, %cst_23 [0] : vector<256x256xf32> to vector<256xf32>
    %27 = vector.shape_cast %26 : vector<256xf32> to vector<1x256xf32>
    %28 = vector.broadcast %27 : vector<1x256xf32> to vector<256x256xf32>
    %29 = arith.subf %25, %28 : vector<256x256xf32>
    %30 = math.exp %29 : vector<256x256xf32>
    %cst_24 = arith.constant dense<0.000000e+00> : vector<256xf32>
    %31 = vector.multi_reduction <add>, %30, %cst_24 [0] : vector<256x256xf32> to vector<256xf32>
    %32 = vector.shape_cast %31 : vector<256xf32> to vector<1x256xf32>
    %cst_25 = arith.constant dense<0.000000e+00> : vector<32x256xf32>
    %33 = tpu.matmul %18, %30, %cst_25 {dimension_numbers = #tpu.dot_dimension_numbers<[1], [0], [0], [1], [0, 0, 1, 1], [], []>} : vector<32x256xf32>, vector<256x256xf32>, vector<32x256xf32> -> vector<32x256xf32>
    %c0_26 = arith.constant 0 : index
    %34 = memref.load %arg1[%c0_26] : memref<1xf32, #tpu.memory_space<smem>>
    %35 = vector.broadcast %34 : f32 to vector<1x256xf32>
    %36 = arith.divf %35, %32 : vector<1x256xf32>
    %37 = vector.broadcast %36 : vector<1x256xf32> to vector<32x256xf32>
    %38 = arith.mulf %33, %37 : vector<32x256xf32>
    %39 = arith.mulf %38, %8 : vector<32x256xf32>
    %c0_27 = arith.constant 0 : index
    %c0_28 = arith.constant 0 : index
    %c0_29 = arith.constant 0 : index
    %40 = vector.load %arg11[%c0_27, %c0_28, %c0_29] : memref<1x32x256xf32, #tpu.memory_space<vmem>>, vector<1x32x256xf32>
    %41 = vector.shape_cast %40 : vector<1x32x256xf32> to vector<32x256xf32>
    %42 = vector.shape_cast %39 : vector<32x256xf32> to vector<1x32x256xf32>
    tpu.vector_store %arg11[%c0_27, %c0_28, %c0_29], %42 {strides = array<i32>} : memref<1x32x256xf32, #tpu.memory_space<vmem>>, vector<1x32x256xf32>,
    return
  }
  func.func @transform_0(%arg0: i32) -> i32 {
    %c0_i32 = arith.constant 0 : i32
    %c0_i32_0 = arith.constant 0 : i32
    return %c0_i32 : i32
  }
  func.func @transform_1(%arg0: i32) -> (i32, i32, i32) {
    %c0_i32 = arith.constant 0 : i32
    %c0_i32_0 = arith.constant 0 : i32
    %c0_i32_1 = arith.constant 0 : i32
    return %arg0, %c0_i32, %c0_i32_0 : i32, i32, i32
  }
  func.func @transform_2(%arg0: i32) -> (i32, i32) {
    %c0_i32 = arith.constant 0 : i32
    %c0_i32_0 = arith.constant 0 : i32
    %c0_i32_1 = arith.constant 0 : i32
    return %c0_i32, %c0_i32_0 : i32, i32
  }
  func.func @transform_3(%arg0: i32) -> (i32, i32) {
    %c0_i32 = arith.constant 0 : i32
    %c0_i32_0 = arith.constant 0 : i32
    %c0_i32_1 = arith.constant 0 : i32
    return %c0_i32, %c0_i32_0 : i32, i32
  }
  func.func @transform_4(%arg0: i32) -> (i32, i32) {
    %c0_i32 = arith.constant 0 : i32
    %c0_i32_0 = arith.constant 0 : i32
    %c0_i32_1 = arith.constant 0 : i32
    return %c0_i32, %c0_i32_0 : i32, i32
  }
  func.func @transform_5(%arg0: i32) -> (i32, i32) {
    %c0_i32 = arith.constant 0 : i32
    %c0_i32_0 = arith.constant 0 : i32
    %c0_i32_1 = arith.constant 0 : i32
    return %c0_i32, %c0_i32_0 : i32, i32
  }
  func.func @transform_6(%arg0: i32) -> (i32, i32) {
    %c0_i32 = arith.constant 0 : i32
    %c0_i32_0 = arith.constant 0 : i32
    %c0_i32_1 = arith.constant 0 : i32
    return %c0_i32, %c0_i32_0 : i32, i32
  }
  func.func @transform_7(%arg0: i32) -> (i32, i32) {
    %c0_i32 = arith.constant 0 : i32
    %c0_i32_0 = arith.constant 0 : i32
    %c0_i32_1 = arith.constant 0 : i32
    return %c0_i32, %c0_i32_0 : i32, i32
  }
  func.func @transform_8(%arg0: i32) -> (i32, i32) {
    %c0_i32 = arith.constant 0 : i32
    %c0_i32_0 = arith.constant 0 : i32
    %c0_i32_1 = arith.constant 0 : i32
    return %c0_i32, %c0_i32_0 : i32, i32
  }
  func.func @transform_9(%arg0: i32) -> (i32, i32) {
    %c0_i32 = arith.constant 0 : i32
    %c0_i32_0 = arith.constant 0 : i32
    %c0_i32_1 = arith.constant 0 : i32
    return %c0_i32, %c0_i32_0 : i32, i32
  }
  func.func @transform_10(%arg0: i32) -> (i32, i32, i32) {
    %c0_i32 = arith.constant 0 : i32
    %c0_i32_0 = arith.constant 0 : i32
    %c0_i32_1 = arith.constant 0 : i32
    return %arg0, %c0_i32, %c0_i32_0 : i32, i32, i32
  }
}

</mosaic_0001>

<llo_original>
// kernel: tpu_custom_call.1
$region0: #{tpu_custom_call.1}
  #allocation0 [shape = 'u32[]', space=smem, size = 0x4, offset = 0x4, fixed_abs, tag = 'smem constant byte address 0x4 - core index']
  #allocation1 [shape = 'u32[72,128]{1,0:T(1,128)}', space=vmem, size = 0x9000, scoped, tag = 'internal scratch']
  #allocation2 [shape = 'f32[1]{0:T(128)S(6)}', space=smem, size = 0x200, scoped, tag = 'scoped memory for tpu_custom_call.1']
  %s0 = inlined_call_operand.<no memory space> [shape: f32[1], index: 0, kind: input, shape index: {}]
  %s1 = inlined_call_operand.vmem [shape: f32[2,4,256], index: 1, kind: input, shape index: {}]
  %s2 = inlined_call_operand.vmem [shape: f32[32,4], index: 2, kind: input, shape index: {}]
  %s3 = inlined_call_operand.vmem [shape: f32[32,1], index: 3, kind: input, shape index: {}]
  %s4 = inlined_call_operand.vmem [shape: f32[4,32], index: 4, kind: input, shape index: {}]
  %s5 = inlined_call_operand.vmem [shape: f32[4,1], index: 5, kind: input, shape index: {}]
  %s6 = inlined_call_operand.vmem [shape: f32[32,4], index: 6, kind: input, shape index: {}]
  %s7 = inlined_call_operand.vmem [shape: f32[1,4], index: 7, kind: input, shape index: {}]
  %s8 = inlined_call_operand.vmem [shape: f32[32,32], index: 8, kind: input, shape index: {}]
  %s9 = inlined_call_operand.vmem [shape: f32[32,1], index: 9, kind: input, shape index: {}]
  %s10 = inlined_call_operand.hbm [shape: f32[2,32,256], index: 10, kind: output, shape index: {}]
  %s11 = sld [smem:[#allocation0]]
  $region73: #{tpu_custom_call.1} parent=0
    _
  %s13 = ssub.s32 1, %s11
  %s14 = scalar_select 0, %s13, %s11
  %15 = sst [smem:[#allocation2]] %s0
  $region1: #{tpu_custom_call.1} parent=0
    #allocation3 [shape = 'u8[65536]{0}', space=vmem, size = 0x10000, scoped, tag = 'output window, operand 0']
    #allocation4 [shape = 's32[2]{0}', space=sflag, size = 0x8, scoped, tag = 'scoped memory for tpu_custom_call.1']
    %16 = vsyncpa [#allocation4], 0
    %s17 = scalar_lea.sflag [#allocation4], 1
    %18 = vsyncpa %s17, 0
    loop: start=0, step=1, limit=4
    $region2: #{tpu_custom_call.1} parent=1 // loop_pre_header
      _
    $region3: #{tpu_custom_call.1} parent=1 // loop_header
      %s20 = sphi 0, %s24
      %p21 = scmp.ge.s32.totalorder %s20, 4
      %s28 = sphi 0, %s28
      %s30 = sphi 0, %s28
      %s31 = sphi 0, %s30
      %s45 = sphi 0, %s31
      %s51 = sphi 0, %s53
      %s54 = sphi 0, %s51
      %s55 = sphi 0, %s54
      %s71 = sphi 0, %s55
      %s75 = sphi 0, %s75
      %s77 = sphi 0, %s75
      %s78 = sphi 0, %s77
      %s92 = sphi 0, %s78
      %s96 = sphi 0, %s96
      %s98 = sphi 0, %s96
      %s99 = sphi 0, %s98
      %s113 = sphi 0, %s99
      %s117 = sphi 0, %s117
      %s119 = sphi 0, %s117
      %s120 = sphi 0, %s119
      %s134 = sphi 0, %s120
      %s138 = sphi 0, %s138
      %s140 = sphi 0, %s138
      %s141 = sphi 0, %s140
      %s155 = sphi 0, %s141
      %s159 = sphi 0, %s159
      %s161 = sphi 0, %s159
      %s162 = sphi 0, %s161
      %s176 = sphi 0, %s162
      %s180 = sphi 0, %s180
      %s182 = sphi 0, %s180
      %s183 = sphi 0, %s182
      %s197 = sphi 0, %s183
      %s201 = sphi 0, %s201
      %s203 = sphi 0, %s201
      %s204 = sphi 0, %s203
      %s218 = sphi 0, %s204
      %s222 = sphi 0, %s222
      %s224 = sphi 0, %s222
      %s225 = sphi 0, %s224
      %s239 = sphi 0, %s225
      %s245 = sphi 0, %s247
      %s248 = sphi 0, %s245
      %s249 = sphi 0, %s248
      %s265 = sphi 0, %s249
    $region4: #{tpu_custom_call.1} parent=1 // loop_header_branch
      %23 = sbr.rel (%p21) target = $region8
    $region5: #{tpu_custom_call.1} parent=1 // loop_body
      %s25 = ssub.s32 %s20, 1
      %s26 = ssub.s32 %s20, 2
      %s27 = sadd.s32 %s20, 1
      %s29 = sadd.s32 %s28, 1
      %p32 = scmp.eq.s32.totalorder %s20, 1
      %p33 = scmp.ne.s32.totalorder %s28, %s30
      %p34 = scmp.eq.s32.totalorder %s20, 0
      %p35 = por %p33, %p34
      %p36 = scmp.ne.s32.totalorder %s28, %s30
      %p37 = scmp.eq.s32.totalorder %s25, 1
      %p38 = por %p36, %p37
      %p39 = scmp.ne.s32.totalorder %s30, %s31
      %p40 = scmp.eq.s32.totalorder %s25, 0
      %p41 = por %p39, %p40
      %p42 = scmp.ne.s32.totalorder %s30, %s31
      %p43 = scmp.eq.s32.totalorder %s26, 1
      %p44 = por %p42, %p43
      %p46 = scmp.ne.s32.totalorder %s31, %s45
      %p47 = scmp.eq.s32.totalorder %s26, 0
      %p48 = por %p46, %p47
      %s49 = ssub.s32 %s20, %s27
      %p50 = scmp.eq.s32.totalorder %s49, 0
      %s52 = sadd.s32 %s51, 1
      %s53 = scalar_select %p50, %s51, %s52
      %p56 = pneg %p50
      %p57 = scmp.eq.s32.totalorder %s20, 1
      %p58 = por %p56, %p57
      %p59 = scmp.ne.s32.totalorder %s51, %s54
      %p60 = scmp.eq.s32.totalorder %s20, 0
      %p61 = por %p59, %p60
      %p62 = scmp.ne.s32.totalorder %s51, %s54
      %p63 = scmp.eq.s32.totalorder %s25, 1
      %p64 = por %p62, %p63
      %p65 = scmp.ne.s32.totalorder %s54, %s55
      %p66 = scmp.eq.s32.totalorder %s25, 0
      %p67 = por %p65, %p66
      %p68 = scmp.ne.s32.totalorder %s54, %s55
      %p69 = scmp.eq.s32.totalorder %s26, 1
      %p70 = por %p68, %p69
      %p72 = scmp.ne.s32.totalorder %s55, %s71
      %p73 = scmp.eq.s32.totalorder %s26, 0
      %p74 = por %p72, %p73
      %s76 = sadd.s32 %s75, 1
      %p79 = scmp.eq.s32.totalorder %s20, 1
      %p80 = scmp.ne.s32.totalorder %s75, %s77
      %p81 = scmp.eq.s32.totalorder %s20, 0
      %p82 = por %p80, %p81
      %p83 = scmp.ne.s32.totalorder %s75, %s77
      %p84 = scmp.eq.s32.totalorder %s25, 1
      %p85 = por %p83, %p84
      %p86 = scmp.ne.s32.totalorder %s77, %s78
      %p87 = scmp.eq.s32.totalorder %s25, 0
      %p88 = por %p86, %p87
      %p89 = scmp.ne.s32.totalorder %s77, %s78
      %p90 = scmp.eq.s32.totalorder %s26, 1
      %p91 = por %p89, %p90
      %p93 = scmp.ne.s32.totalorder %s78, %s92
      %p94 = scmp.eq.s32.totalorder %s26, 0
      %p95 = por %p93, %p94
      %s97 = sadd.s32 %s96, 1
      %p100 = scmp.eq.s32.totalorder %s20, 1
      %p101 = scmp.ne.s32.totalorder %s96, %s98
      %p102 = scmp.eq.s32.totalorder %s20, 0
      %p103 = por %p101, %p102
      %p104 = scmp.ne.s32.totalorder %s96, %s98
      %p105 = scmp.eq.s32.totalorder %s25, 1
      %p106 = por %p104, %p105
      %p107 = scmp.ne.s32.totalorder %s98, %s99
      %p108 = scmp.eq.s32.totalorder %s25, 0
      %p109 = por %p107, %p108
      %p110 = scmp.ne.s32.totalorder %s98, %s99
      %p111 = scmp.eq.s32.totalorder %s26, 1
      %p112 = por %p110, %p111
      %p114 = scmp.ne.s32.totalorder %s99, %s113
      %p115 = scmp.eq.s32.totalorder %s26, 0
      %p116 = por %p114, %p115
      %s118 = sadd.s32 %s117, 1
      %p121 = scmp.eq.s32.totalorder %s20, 1
      %p122 = scmp.ne.s32.totalorder %s117, %s119
      %p123 = scmp.eq.s32.totalorder %s20, 0
      %p124 = por %p122, %p123
      %p125 = scmp.ne.s32.totalorder %s117, %s119
      %p126 = scmp.eq.s32.totalorder %s25, 1
      %p127 = por %p125, %p126
      %p128 = scmp.ne.s32.totalorder %s119, %s120
      %p129 = scmp.eq.s32.totalorder %s25, 0
      %p130 = por %p128, %p129
      %p131 = scmp.ne.s32.totalorder %s119, %s120
      %p132 = scmp.eq.s32.totalorder %s26, 1
      %p133 = por %p131, %p132
      %p135 = scmp.ne.s32.totalorder %s120, %s134
      %p136 = scmp.eq.s32.totalorder %s26, 0
      %p137 = por %p135, %p136
      %s139 = sadd.s32 %s138, 1
      %p142 = scmp.eq.s32.totalorder %s20, 1
      %p143 = scmp.ne.s32.totalorder %s138, %s140
      %p144 = scmp.eq.s32.totalorder %s20, 0
      %p145 = por %p143, %p144
      %p146 = scmp.ne.s32.totalorder %s138, %s140
      %p147 = scmp.eq.s32.totalorder %s25, 1
      %p148 = por %p146, %p147
      %p149 = scmp.ne.s32.totalorder %s140, %s141
      %p150 = scmp.eq.s32.totalorder %s25, 0
      %p151 = por %p149, %p150
      %p152 = scmp.ne.s32.totalorder %s140, %s141
      %p153 = scmp.eq.s32.totalorder %s26, 1
      %p154 = por %p152, %p153
      %p156 = scmp.ne.s32.totalorder %s141, %s155
      %p157 = scmp.eq.s32.totalorder %s26, 0
      %p158 = por %p156, %p157
      %s160 = sadd.s32 %s159, 1
      %p163 = scmp.eq.s32.totalorder %s20, 1
      %p164 = scmp.ne.s32.totalorder %s159, %s161
      %p165 = scmp.eq.s32.totalorder %s20, 0
      %p166 = por %p164, %p165
      %p167 = scmp.ne.s32.totalorder %s159, %s161
      %p168 = scmp.eq.s32.totalorder %s25, 1
      %p169 = por %p167, %p168
      %p170 = scmp.ne.s32.totalorder %s161, %s162
      %p171 = scmp.eq.s32.totalorder %s25, 0
      %p172 = por %p170, %p171
      %p173 = scmp.ne.s32.totalorder %s161, %s162
      %p174 = scmp.eq.s32.totalorder %s26, 1
      %p175 = por %p173, %p174
      %p177 = scmp.ne.s32.totalorder %s162, %s176
      %p178 = scmp.eq.s32.totalorder %s26, 0
      %p179 = por %p177, %p178
      %s181 = sadd.s32 %s180, 1
      %p184 = scmp.eq.s32.totalorder %s20, 1
      %p185 = scmp.ne.s32.totalorder %s180, %s182
      %p186 = scmp.eq.s32.totalorder %s20, 0
      %p187 = por %p185, %p186
      %p188 = scmp.ne.s32.totalorder %s180, %s182
      %p189 = scmp.eq.s32.totalorder %s25, 1
      %p190 = por %p188, %p189
      %p191 = scmp.ne.s32.totalorder %s182, %s183
      %p192 = scmp.eq.s32.totalorder %s25, 0
      %p193 = por %p191, %p192
      %p194 = scmp.ne.s32.totalorder %s182, %s183
      %p195 = scmp.eq.s32.totalorder %s26, 1
      %p196 = por %p194, %p195
      %p198 = scmp.ne.s32.totalorder %s183, %s197
      %p199 = scmp.eq.s32.totalorder %s26, 0
      %p200 = por %p198, %p199
      %s202 = sadd.s32 %s201, 1
      %p205 = scmp.eq.s32.totalorder %s20, 1
      %p206 = scmp.ne.s32.totalorder %s201, %s203
      %p207 = scmp.eq.s32.totalorder %s20, 0
      %p208 = por %p206, %p207
      %p209 = scmp.ne.s32.totalorder %s201, %s203
      %p210 = scmp.eq.s32.totalorder %s25, 1
      %p211 = por %p209, %p210
      %p212 = scmp.ne.s32.totalorder %s203, %s204
      %p213 = scmp.eq.s32.totalorder %s25, 0
      %p214 = por %p212, %p213
      %p215 = scmp.ne.s32.totalorder %s203, %s204
      %p216 = scmp.eq.s32.totalorder %s26, 1
      %p217 = por %p215, %p216
      %p219 = scmp.ne.s32.totalorder %s204, %s218
      %p220 = scmp.eq.s32.totalorder %s26, 0
      %p221 = por %p219, %p220
      %s223 = sadd.s32 %s222, 1
      %p226 = scmp.eq.s32.totalorder %s20, 1
      %p227 = scmp.ne.s32.totalorder %s222, %s224
      %p228 = scmp.eq.s32.totalorder %s20, 0
      %p229 = por %p227, %p228
      %p230 = scmp.ne.s32.totalorder %s222, %s224
      %p231 = scmp.eq.s32.totalorder %s25, 1
      %p232 = por %p230, %p231
      %p233 = scmp.ne.s32.totalorder %s224, %s225
      %p234 = scmp.eq.s32.totalorder %s25, 0
      %p235 = por %p233, %p234
      %p236 = scmp.ne.s32.totalorder %s224, %s225
      %p237 = scmp.eq.s32.totalorder %s26, 1
      %p238 = por %p236, %p237
      %p240 = scmp.ne.s32.totalorder %s225, %s239
      %p241 = scmp.eq.s32.totalorder %s26, 0
      %p242 = por %p240, %p241
      %s243 = ssub.s32 %s20, %s27
      %p244 = scmp.eq.s32.totalorder %s243, 0
      %s246 = sadd.s32 %s245, 1
      %s247 = scalar_select %p244, %s245, %s246
      %p250 = pneg %p244
      %p251 = scmp.eq.s32.totalorder %s20, 1
      %p252 = por %p250, %p251
      %p253 = scmp.ne.s32.totalorder %s245, %s248
      %p254 = scmp.eq.s32.totalorder %s20, 0
      %p255 = por %p253, %p254
      %p256 = scmp.ne.s32.totalorder %s245, %s248
      %p257 = scmp.eq.s32.totalorder %s25, 1
      %p258 = por %p256, %p257
      %p259 = scmp.ne.s32.totalorder %s248, %s249
      %p260 = scmp.eq.s32.totalorder %s25, 0
      %p261 = por %p259, %p260
      %p262 = scmp.ne.s32.totalorder %s248, %s249
      %p263 = scmp.eq.s32.totalorder %s26, 1
      %p264 = por %p262, %p263
      %p266 = scmp.ne.s32.totalorder %s249, %s265
      %p267 = scmp.eq.s32.totalorder %s26, 0
      %p268 = por %p266, %p267
      %p269 = scmp.le.s32.totalorder 1, %s20
      %p270 = scmp.lt.s32.totalorder %s20, 3
      %p271 = pnand %p269, %p270
      %p272 = pneg %p271
      // Predicated region
      $region9: #{tpu_custom_call.1} parent=5 // pred_check
        _
      $region10: #{tpu_custom_call.1} parent=5 // pred_check_branch
        %274 = sbr.rel (%p271) target = $region12
      $region11: #{tpu_custom_call.1} parent=5 // pred_region
        %s275 = ssub.s32 %s20, 1
        // Predicated region
        $region13: #{tpu_custom_call.1} parent=11 // pred_check
          %p276 = pneg %p41
        $region14: #{tpu_custom_call.1} parent=11 // pred_check_branch
          %278 = sbr.rel (%p276) target = $region16
        $region15: #{tpu_custom_call.1} parent=11 // pred_region
          _
        $region16: #{tpu_custom_call.1} parent=11 // pred_fallthru
          _
        // Predicated region
        $region17: #{tpu_custom_call.1} parent=11 // pred_check
          %p279 = pneg %p88
        $region18: #{tpu_custom_call.1} parent=11 // pred_check_branch
          %281 = sbr.rel (%p279) target = $region20
        $region19: #{tpu_custom_call.1} parent=11 // pred_region
          _
        $region20: #{tpu_custom_call.1} parent=11 // pred_fallthru
          _
        // Predicated region
        $region21: #{tpu_custom_call.1} parent=11 // pred_check
          %p282 = pneg %p109
        $region22: #{tpu_custom_call.1} parent=11 // pred_check_branch
          %284 = sbr.rel (%p282) target = $region24
        $region23: #{tpu_custom_call.1} parent=11 // pred_region
          _
        $region24: #{tpu_custom_call.1} parent=11 // pred_fallthru
          _
        // Predicated region
        $region25: #{tpu_custom_call.1} parent=11 // pred_check
          %p285 = pneg %p130
        $region26: #{tpu_custom_call.1} parent=11 // pred_check_branch
          %287 = sbr.rel (%p285) target = $region28
        $region27: #{tpu_custom_call.1} parent=11 // pred_region
          _
        $region28: #{tpu_custom_call.1} parent=11 // pred_fallthru
          _
        // Predicated region
        $region29: #{tpu_custom_call.1} parent=11 // pred_check
          %p288 = pneg %p151
        $region30: #{tpu_custom_call.1} parent=11 // pred_check_branch
          %290 = sbr.rel (%p288) target = $region32
        $region31: #{tpu_custom_call.1} parent=11 // pred_region
          _
        $region32: #{tpu_custom_call.1} parent=11 // pred_fallthru
          _
        // Predicated region
        $region33: #{tpu_custom_call.1} parent=11 // pred_check
          %p291 = pneg %p172
        $region34: #{tpu_custom_call.1} parent=11 // pred_check_branch
          %293 = sbr.rel (%p291) target = $region36
        $region35: #{tpu_custom_call.1} parent=11 // pred_region
          _
        $region36: #{tpu_custom_call.1} parent=11 // pred_fallthru
          _
        // Predicated region
        $region37: #{tpu_custom_call.1} parent=11 // pred_check
          %p294 = pneg %p193
        $region38: #{tpu_custom_call.1} parent=11 // pred_check_branch
          %296 = sbr.rel (%p294) target = $region40
        $region39: #{tpu_custom_call.1} parent=11 // pred_region
          _
        $region40: #{tpu_custom_call.1} parent=11 // pred_fallthru
          _
        // Predicated region
        $region41: #{tpu_custom_call.1} parent=11 // pred_check
          %p297 = pneg %p214
        $region42: #{tpu_custom_call.1} parent=11 // pred_check_branch
          %299 = sbr.rel (%p297) target = $region44
        $region43: #{tpu_custom_call.1} parent=11 // pred_region
          _
        $region44: #{tpu_custom_call.1} parent=11 // pred_fallthru
          _
        // Predicated region
        $region45: #{tpu_custom_call.1} parent=11 // pred_check
          %p300 = pneg %p235
        $region46: #{tpu_custom_call.1} parent=11 // pred_check_branch
          %302 = sbr.rel (%p300) target = $region48
        $region47: #{tpu_custom_call.1} parent=11 // pred_region
          _
        $region48: #{tpu_custom_call.1} parent=11 // pred_fallthru
          _
      $region12: #{tpu_custom_call.1} parent=5 // pred_fallthru
        _
      %p303 = scmp.lt.s32.totalorder %s20, 2
      // Predicated region
      $region49: #{tpu_custom_call.1} parent=5 // pred_check
        %p304 = pneg %p303
      $region50: #{tpu_custom_call.1} parent=5 // pred_check_branch
        %306 = sbr.rel (%p304) target = $region52
      $region51: #{tpu_custom_call.1} parent=5 // pred_region
        // Predicated region
        $region53: #{tpu_custom_call.1} parent=51 // pred_check
          %p307 = pneg %p61
        $region54: #{tpu_custom_call.1} parent=51 // pred_check_branch
          %309 = sbr.rel (%p307) target = $region56
        $region55: #{tpu_custom_call.1} parent=51 // pred_region
          %p310 = scmp.lt.s32.totalorder %s20, 1
          %s311 = scalar_select %p310, %s20, 1
          %s312 = smul.addr %s311, 2
          %s313 = smul.addr %s312, 4
          %s314 = scalar_lea.vmem %s1, %s313
        $region56: #{tpu_custom_call.1} parent=51 // pred_fallthru
          _
      $region52: #{tpu_custom_call.1} parent=5 // pred_fallthru
        _
      %p315 = scmp.le.s32.totalorder 1, %s20
      %p316 = scmp.lt.s32.totalorder %s20, 3
      %p317 = pnand %p315, %p316
      %p318 = pneg %p317
      // Predicated region
      $region57: #{tpu_custom_call.1} parent=5 // pred_check
        _
      $region58: #{tpu_custom_call.1} parent=5 // pred_check_branch
        %320 = sbr.rel (%p317) target = $region60
      $region59: #{tpu_custom_call.1} parent=5 // pred_region
        %s321 = ssub.s32 %s20, 1
        %p322 = pneg %p41
        %p323 = pneg %p38
        %p324 = scmp.lt.s32.totalorder %s25, 1
        %s325 = scalar_select %p324, %s25, 1
        %s326 = smul.addr %s325, 2
        %s327 = smul.addr %s326, 4
        %s328 = scalar_lea.vmem %s1, %s327
        %p329 = pneg %p67
        %p330 = pneg %p64
        %p331 = pneg %p88
        %p332 = pneg %p85
        %p333 = pneg %p109
        %p334 = pneg %p106
        %p335 = pneg %p130
        %p336 = pneg %p127
        %p337 = pneg %p151
        %p338 = pneg %p148
        %p339 = pneg %p172
        %p340 = pneg %p169
        %p341 = pneg %p193
        %p342 = pneg %p190
        %p343 = pneg %p214
        %p344 = pneg %p211
        %p345 = pneg %p235
        %p346 = pneg %p232
        %p347 = pneg %p261
        %p348 = pneg %p258
        %s349 = sand.u32 %s248, 1
        %s350 = scalar_lea.sflag [#allocation4], %s349
        %s351 = sand.u32 %s248, 1
        %s352 = smul.addr %s351, 64
        %s353 = scalar_lea.vmem [#allocation3], %s352
        %p354 = scmp.lt.s32.totalorder %s25, 1
        %s355 = scalar_select %p354, %s25, 1
        %s356 = smul.addr %s355, 2
        %s357 = smul.addr %s356, 4
        %s358 = scalar_lea.vmem %s1, %s357
        %v359 = vld [vmem:[%s358] sm:$0xff]
        %v360 = vld [vmem:[%s2] sm:$0xff]
        %v361 = vld [vmem:[%s2 + $0x8] sm:$0xff]
        %v362 = vld [vmem:[%s2 + $0x10] sm:$0xff]
        %v363 = vld [vmem:[%s2 + $0x18] sm:$0xff]
        %v364 = vld [vmem:[%s3] sm:$0xff]
        %v365 = vld [vmem:[%s3 + $0x8] sm:$0xff]
        %v366 = vld [vmem:[%s3 + $0x10] sm:$0xff]
        %v367 = vld [vmem:[%s3 + $0x18] sm:$0xff]
        %369 = vset.pattern.permute.xlu0 0
        %370 = vperm.xlu0 %369, %v364
        %v371 = vpop.permute.xlu0 %370
        %374 = vset.pattern.permute.xlu0 0
        %375 = vperm.xlu0 %374, %v365
        %v376 = vpop.permute.xlu0 %375
        %379 = vset.pattern.permute.xlu0 0
        %380 = vperm.xlu0 %379, %v366
        %v381 = vpop.permute.xlu0 %380
        %384 = vset.pattern.permute.xlu0 0
        %385 = vperm.xlu0 %384, %v367
        %v386 = vpop.permute.xlu0 %385
        %389 = vst [vmem:[#allocation1] ss:$2 sm:$0xff] %v359
        %v390 = vld.sshfl [vmem:[#allocation1] sm:$0xff pattern:$0x75316420]
        %v391 = vld.sshfl [vmem:[#allocation1 + $0x8] sm:$0xff pattern:$0x75316420]
        %vm392 = vcmask 31744
        %v394 = vsel %vm392, %v360, 0
        %v397 = vsel %vm392, %v361, 0
        %v400 = vsel %vm392, %v362, 0
        %v403 = vsel %vm392, %v363, 0
        %vm405 = vcmask 1043456
        %v406 = vsel %vm405, %v390, 0
        %v408 = vsel %vm405, %v391, 0
        %410 = vmatpush.msra.mxu0 0.0
        %411 = vmatpush.msra.mxu0 0.0
        %412 = vmatpush.msra.mxu0 0.0
        %413 = vmatpush.msra.mxu0 0.0
        %414 = vmatpush.msra.mxu0 0.0
        %415 = vmatpush.msra.mxu0 0.0
        %416 = vmatpush.msra.mxu0 0.0
        %417 = vmatpush.msra.mxu0 0.0
        %418 = vmatpush.msra.mxu0 0.0
        %419 = vmatpush.msra.mxu0 0.0
        %420 = vmatpush.msra.mxu0 0.0
        %421 = vmatpush.msra.mxu0 0.0
        %422 = vmatpush.msra.mxu0 0.0
        %423 = vmatpush.msra.mxu0 0.0
        %424 = vmatpush.msra.mxu0 0.0
        %425 = vmatpush.msra.mxu0 %v406
        %426 = vmatmul.f32.gmra.mxu0 %v394
        %v427 = vpop.f32.mrf.mxu0
        %v428 = vadd.f32 %v371, %v427
        %429 = vmatmul.f32.gmra.mxu0 %v397
        %v430 = vpop.f32.mrf.mxu0
        %v431 = vadd.f32 %v376, %v430
        %432 = vmatmul.f32.gmra.mxu0 %v400
        %v433 = vpop.f32.mrf.mxu0
        %v434 = vadd.f32 %v381, %v433
        %435 = vmatmul.f32.gmra.mxu0 %v403
        %v436 = vpop.f32.mrf.mxu0
        %v437 = vadd.f32 %v386, %v436
        %438 = vdwg.mxu0
        %439 = vmatpush.msra.mxu0 0.0
        %440 = vmatpush.msra.mxu0 0.0
        %441 = vmatpush.msra.mxu0 0.0
        %442 = vmatpush.msra.mxu0 0.0
        %443 = vmatpush.msra.mxu0 0.0
        %444 = vmatpush.msra.mxu0 0.0
        %445 = vmatpush.msra.mxu0 0.0
        %446 = vmatpush.msra.mxu0 0.0
        %447 = vmatpush.msra.mxu0 0.0
        %448 = vmatpush.msra.mxu0 0.0
        %449 = vmatpush.msra.mxu0 0.0
        %450 = vmatpush.msra.mxu0 0.0
        %451 = vmatpush.msra.mxu0 0.0
        %452 = vmatpush.msra.mxu0 0.0
        %453 = vmatpush.msra.mxu0 0.0
        %454 = vmatpush.msra.mxu0 %v408
        %455 = vmatmul.f32.gmra.mxu0 %v394
        %v456 = vpop.f32.mrf.mxu0
        %v457 = vadd.f32 %v371, %v456
        %458 = vmatmul.f32.gmra.mxu0 %v397
        %v459 = vpop.f32.mrf.mxu0
        %v460 = vadd.f32 %v376, %v459
        %461 = vmatmul.f32.gmra.mxu0 %v400
        %v462 = vpop.f32.mrf.mxu0
        %v463 = vadd.f32 %v381, %v462
        %464 = vmatmul.f32.gmra.mxu0 %v403
        %v465 = vpop.f32.mrf.mxu0
        %v466 = vadd.f32 %v386, %v465
        %467 = vdwg.mxu0
        %v468 = vmax.f32 %v428, 0.0
        %v469 = vmax.f32 %v457, 0.0
        %v470 = vmax.f32 %v431, 0.0
        %v471 = vmax.f32 %v460, 0.0
        %v472 = vmax.f32 %v434, 0.0
        %v473 = vmax.f32 %v463, 0.0
        %v474 = vmax.f32 %v437, 0.0
        %v475 = vmax.f32 %v466, 0.0
        %v476 = vld [vmem:[%s4] sm:$0xf]
        %v477 = vld [vmem:[%s5] sm:$0xf]
        %479 = vset.pattern.permute.xlu0 0
        %480 = vperm.xlu0 %479, %v477
        %v481 = vpop.permute.xlu0 %480
        %vm483 = vcmask 261120
        %v485 = vsel %vm483, %v476, 0
        %487 = vmatpush.msra.mxu0 0.0
        %488 = vmatpush.msra.mxu0 0.0
        %489 = vmatpush.msra.mxu0 0.0
        %490 = vmatpush.msra.mxu0 0.0
        %491 = vmatpush.msra.mxu0 0.0
        %492 = vmatpush.msra.mxu0 0.0
        %493 = vmatpush.msra.mxu0 0.0
        %494 = vmatpush.msra.mxu0 0.0
        %495 = vmatpush.msra.mxu0 0.0
        %496 = vmatpush.msra.mxu0 0.0
        %497 = vmatpush.msra.mxu0 0.0
        %498 = vmatpush.msra.mxu0 0.0
        %499 = vmatpush.msra.mxu0 %v474
        %500 = vmatpush.msra.mxu0 %v472
        %501 = vmatpush.msra.mxu0 %v470
        %502 = vmatpush.msra.mxu0 %v468
        %503 = vmatmul.f32.gmra.mxu0 %v485
        %v504 = vpop.f32.mrf.mxu0
        %v505 = vadd.f32 %v481, %v504
        %506 = vdwg.mxu0
        %507 = vmatpush.msra.mxu0 0.0
        %508 = vmatpush.msra.mxu0 0.0
        %509 = vmatpush.msra.mxu0 0.0
        %510 = vmatpush.msra.mxu0 0.0
        %511 = vmatpush.msra.mxu0 0.0
        %512 = vmatpush.msra.mxu0 0.0
        %513 = vmatpush.msra.mxu0 0.0
        %514 = vmatpush.msra.mxu0 0.0
        %515 = vmatpush.msra.mxu0 0.0
        %516 = vmatpush.msra.mxu0 0.0
        %517 = vmatpush.msra.mxu0 0.0
        %518 = vmatpush.msra.mxu0 0.0
        %519 = vmatpush.msra.mxu0 %v475
        %520 = vmatpush.msra.mxu0 %v473
        %521 = vmatpush.msra.mxu0 %v471
        %522 = vmatpush.msra.mxu0 %v469
        %523 = vmatmul.f32.gmra.mxu0 %v485
        %v524 = vpop.f32.mrf.mxu0
        %v525 = vadd.f32 %v481, %v524
        %526 = vdwg.mxu0
        %v527 = vld [vmem:[%s8] sm:$0xff]
        %v528 = vld [vmem:[%s8 + $0x8] sm:$0xff]
        %v529 = vld [vmem:[%s8 + $0x10] sm:$0xff]
        %v530 = vld [vmem:[%s8 + $0x18] sm:$0xff]
        %v531 = vld [vmem:[%s9] sm:$0xff]
        %v532 = vld [vmem:[%s9 + $0x8] sm:$0xff]
        %v533 = vld [vmem:[%s9 + $0x10] sm:$0xff]
        %v534 = vld [vmem:[%s9 + $0x18] sm:$0xff]
        %536 = vset.pattern.permute.xlu0 0
        %537 = vperm.xlu0 %536, %v531
        %v538 = vpop.permute.xlu0 %537
        %541 = vset.pattern.permute.xlu0 0
        %542 = vperm.xlu0 %541, %v532
        %v543 = vpop.permute.xlu0 %542
        %546 = vset.pattern.permute.xlu0 0
        %547 = vperm.xlu0 %546, %v533
        %v548 = vpop.permute.xlu0 %547
        %551 = vset.pattern.permute.xlu0 0
        %552 = vperm.xlu0 %551, %v534
        %v553 = vpop.permute.xlu0 %552
        %v556 = vsel %vm483, %v527, 0
        %v559 = vsel %vm483, %v528, 0
        %v562 = vsel %vm483, %v529, 0
        %v565 = vsel %vm483, %v530, 0
        %567 = vmatpush.msra.mxu0 0.0
        %568 = vmatpush.msra.mxu0 0.0
        %569 = vmatpush.msra.mxu0 0.0
        %570 = vmatpush.msra.mxu0 0.0
        %571 = vmatpush.msra.mxu0 0.0
        %572 = vmatpush.msra.mxu0 0.0
        %573 = vmatpush.msra.mxu0 0.0
        %574 = vmatpush.msra.mxu0 0.0
        %575 = vmatpush.msra.mxu0 0.0
        %576 = vmatpush.msra.mxu0 0.0
        %577 = vmatpush.msra.mxu0 0.0
        %578 = vmatpush.msra.mxu0 0.0
        %579 = vmatpush.msra.mxu0 %v474
        %580 = vmatpush.msra.mxu0 %v472
        %581 = vmatpush.msra.mxu0 %v470
        %582 = vmatpush.msra.mxu0 %v468
        %583 = vmatmul.f32.gmra.mxu0 %v556
        %v584 = vpop.f32.mrf.mxu0
        %v585 = vadd.f32 %v538, %v584
        %586 = vmatmul.f32.gmra.mxu0 %v559
        %v587 = vpop.f32.mrf.mxu0
        %v588 = vadd.f32 %v543, %v587
        %589 = vmatmul.f32.gmra.mxu0 %v562
        %v590 = vpop.f32.mrf.mxu0
        %v591 = vadd.f32 %v548, %v590
        %592 = vmatmul.f32.gmra.mxu0 %v565
        %v593 = vpop.f32.mrf.mxu0
        %v594 = vadd.f32 %v553, %v593
        %595 = vdwg.mxu0
        %596 = vmatpush.msra.mxu0 0.0
        %597 = vmatpush.msra.mxu0 0.0
        %598 = vmatpush.msra.mxu0 0.0
        %599 = vmatpush.msra.mxu0 0.0
        %600 = vmatpush.msra.mxu0 0.0
        %601 = vmatpush.msra.mxu0 0.0
        %602 = vmatpush.msra.mxu0 0.0
        %603 = vmatpush.msra.mxu0 0.0
        %604 = vmatpush.msra.mxu0 0.0
        %605 = vmatpush.msra.mxu0 0.0
        %606 = vmatpush.msra.mxu0 0.0
        %607 = vmatpush.msra.mxu0 0.0
        %608 = vmatpush.msra.mxu0 %v475
        %609 = vmatpush.msra.mxu0 %v473
        %610 = vmatpush.msra.mxu0 %v471
        %611 = vmatpush.msra.mxu0 %v469
        %612 = vmatmul.f32.gmra.mxu0 %v556
        %v613 = vpop.f32.mrf.mxu0
        %v614 = vadd.f32 %v538, %v613
        %615 = vmatmul.f32.gmra.mxu0 %v559
        %v616 = vpop.f32.mrf.mxu0
        %v617 = vadd.f32 %v543, %v616
        %618 = vmatmul.f32.gmra.mxu0 %v562
        %v619 = vpop.f32.mrf.mxu0
        %v620 = vadd.f32 %v548, %v619
        %621 = vmatmul.f32.gmra.mxu0 %v565
        %v622 = vpop.f32.mrf.mxu0
        %v623 = vadd.f32 %v553, %v622
        %624 = vdwg.mxu0
        %625 = vxpose.xlu0.b32.start [1/16] %v468, 128
        %626 = vxpose.xlu0.b32.cont [2/16] %v470, 128
        %627 = vxpose.xlu0.b32.cont [3/16] %v472, 128
        %628 = vxpose.xlu0.b32.cont [4/16] %v474, 128
        %629 = vxpose.xlu0.b32.cont [5/16] 0.0, 128
        %630 = vxpose.xlu0.b32.cont [6/16] 0.0, 128
        %631 = vxpose.xlu0.b32.cont [7/16] 0.0, 128
        %632 = vxpose.xlu0.b32.cont [8/16] 0.0, 128
        %633 = vxpose.xlu0.b32.cont [9/16] 0.0, 128
        %634 = vxpose.xlu0.b32.cont [10/16] 0.0, 128
        %635 = vxpose.xlu0.b32.cont [11/16] 0.0, 128
        %636 = vxpose.xlu0.b32.cont [12/16] 0.0, 128
        %637 = vxpose.xlu0.b32.cont [13/16] 0.0, 128
        %638 = vxpose.xlu0.b32.cont [14/16] 0.0, 128
        %639 = vxpose.xlu0.b32.cont [15/16] 0.0, 128
        %640 = vxpose.xlu0.b32.end [16/16] 0.0, 128
        %v641 = vpop.trf.xlu0
        %v642 = vpop.trf.xlu0
        %v643 = vpop.trf.xlu0
        %v644 = vpop.trf.xlu0
        %v645 = vpop.trf.xlu0
        %v646 = vpop.trf.xlu0
        %v647 = vpop.trf.xlu0
        %v648 = vpop.trf.xlu0
        %v649 = vpop.trf.xlu0
        %v650 = vpop.trf.xlu0
        %v651 = vpop.trf.xlu0
        %v652 = vpop.trf.xlu0
        %v653 = vpop.trf.xlu0
        %v654 = vpop.trf.xlu0
        %v655 = vpop.trf.xlu0
        %v656 = vpop.trf.xlu0
        %657 = vxpose.xlu0.b32.start [1/16] %v469, 128
        %658 = vxpose.xlu0.b32.cont [2/16] %v471, 128
        %659 = vxpose.xlu0.b32.cont [3/16] %v473, 128
        %660 = vxpose.xlu0.b32.cont [4/16] %v475, 128
        %661 = vxpose.xlu0.b32.cont [5/16] 0.0, 128
        %662 = vxpose.xlu0.b32.cont [6/16] 0.0, 128
        %663 = vxpose.xlu0.b32.cont [7/16] 0.0, 128
        %664 = vxpose.xlu0.b32.cont [8/16] 0.0, 128
        %665 = vxpose.xlu0.b32.cont [9/16] 0.0, 128
        %666 = vxpose.xlu0.b32.cont [10/16] 0.0, 128
        %667 = vxpose.xlu0.b32.cont [11/16] 0.0, 128
        %668 = vxpose.xlu0.b32.cont [12/16] 0.0, 128
        %669 = vxpose.xlu0.b32.cont [13/16] 0.0, 128
        %670 = vxpose.xlu0.b32.cont [14/16] 0.0, 128
        %671 = vxpose.xlu0.b32.cont [15/16] 0.0, 128
        %672 = vxpose.xlu0.b32.end [16/16] 0.0, 128
        %v673 = vpop.trf.xlu0
        %v674 = vpop.trf.xlu0
        %v675 = vpop.trf.xlu0
        %v676 = vpop.trf.xlu0
        %v677 = vpop.trf.xlu0
        %v678 = vpop.trf.xlu0
        %v679 = vpop.trf.xlu0
        %v680 = vpop.trf.xlu0
        %v681 = vpop.trf.xlu0
        %v682 = vpop.trf.xlu0
        %v683 = vpop.trf.xlu0
        %v684 = vpop.trf.xlu0
        %v685 = vpop.trf.xlu0
        %v686 = vpop.trf.xlu0
        %v687 = vpop.trf.xlu0
        %v688 = vpop.trf.xlu0
        %v689 = vld [vmem:[%s6] sm:$0xff]
        %v690 = vld [vmem:[%s6 + $0x8] sm:$0xff]
        %v691 = vld [vmem:[%s6 + $0x10] sm:$0xff]
        %v692 = vld [vmem:[%s6 + $0x18] sm:$0xff]
        %v693 = vld [vmem:[%s7] sm:$0x1]
        %v695 = vperm.slane %v693, 0
        %v698 = vsel %vm483, %v641, 0
        %v701 = vsel %vm483, %v642, 0
        %v704 = vsel %vm483, %v643, 0
        %v707 = vsel %vm483, %v644, 0
        %v710 = vsel %vm483, %v645, 0
        %v713 = vsel %vm483, %v646, 0
        %v716 = vsel %vm483, %v647, 0
        %v719 = vsel %vm483, %v648, 0
        %v722 = vsel %vm483, %v649, 0
        %v725 = vsel %vm483, %v650, 0
        %v728 = vsel %vm483, %v651, 0
        %v731 = vsel %vm483, %v652, 0
        %v734 = vsel %vm483, %v653, 0
        %v737 = vsel %vm483, %v654, 0
        %v740 = vsel %vm483, %v655, 0
        %v743 = vsel %vm483, %v656, 0
        %v746 = vsel %vm483, %v673, 0
        %v749 = vsel %vm483, %v674, 0
        %v752 = vsel %vm483, %v675, 0
        %v755 = vsel %vm483, %v676, 0
        %v758 = vsel %vm483, %v677, 0
        %v761 = vsel %vm483, %v678, 0
        %v764 = vsel %vm483, %v679, 0
        %v767 = vsel %vm483, %v680, 0
        %v770 = vsel %vm483, %v681, 0
        %v773 = vsel %vm483, %v682, 0
        %v776 = vsel %vm483, %v683, 0
        %v779 = vsel %vm483, %v684, 0
        %v782 = vsel %vm483, %v685, 0
        %v785 = vsel %vm483, %v686, 0
        %v788 = vsel %vm483, %v687, 0
        %v791 = vsel %vm483, %v688, 0
        %793 = vmatpush.msra.mxu0 0.0
        %794 = vmatpush.msra.mxu0 0.0
        %795 = vmatpush.msra.mxu0 0.0
        %796 = vmatpush.msra.mxu0 0.0
        %797 = vmatpush.msra.mxu0 0.0
        %798 = vmatpush.msra.mxu0 0.0
        %799 = vmatpush.msra.mxu0 0.0
        %800 = vmatpush.msra.mxu0 0.0
        %801 = vmatpush.msra.mxu0 0.0
        %802 = vmatpush.msra.mxu0 0.0
        %803 = vmatpush.msra.mxu0 0.0
        %804 = vmatpush.msra.mxu0 0.0
        %805 = vmatpush.msra.mxu0 %v692
        %806 = vmatpush.msra.mxu0 %v691
        %807 = vmatpush.msra.mxu0 %v690
        %808 = vmatpush.msra.mxu0 %v689
        %809 = vmatmul.f32.gmra.mxu0 %v698
        %v810 = vpop.f32.mrf.mxu0
        %v811 = vadd.f32 %v695, %v810
        %812 = vmatmul.f32.gmra.mxu0 %v701
        %v813 = vpop.f32.mrf.mxu0
        %v814 = vadd.f32 %v695, %v813
        %815 = vmatmul.f32.gmra.mxu0 %v704
        %v816 = vpop.f32.mrf.mxu0
        %v817 = vadd.f32 %v695, %v816
        %818 = vmatmul.f32.gmra.mxu0 %v707
        %v819 = vpop.f32.mrf.mxu0
        %v820 = vadd.f32 %v695, %v819
        %821 = vmatmul.f32.gmra.mxu0 %v710
        %v822 = vpop.f32.mrf.mxu0
        %v823 = vadd.f32 %v695, %v822
        %824 = vmatmul.f32.gmra.mxu0 %v713
        %v825 = vpop.f32.mrf.mxu0
        %v826 = vadd.f32 %v695, %v825
        %827 = vmatmul.f32.gmra.mxu0 %v716
        %v828 = vpop.f32.mrf.mxu0
        %v829 = vadd.f32 %v695, %v828
        %830 = vmatmul.f32.gmra.mxu0 %v719
        %v831 = vpop.f32.mrf.mxu0
        %v832 = vadd.f32 %v695, %v831
        %833 = vmatmul.f32.gmra.mxu0 %v722
        %v834 = vpop.f32.mrf.mxu0
        %v835 = vadd.f32 %v695, %v834
        %836 = vmatmul.f32.gmra.mxu0 %v725
        %v837 = vpop.f32.mrf.mxu0
        %v838 = vadd.f32 %v695, %v837
        %839 = vmatmul.f32.gmra.mxu0 %v728
        %v840 = vpop.f32.mrf.mxu0
        %v841 = vadd.f32 %v695, %v840
        %842 = vmatmul.f32.gmra.mxu0 %v731
        %v843 = vpop.f32.mrf.mxu0
        %v844 = vadd.f32 %v695, %v843
        %845 = vmatmul.f32.gmra.mxu0 %v734
        %v846 = vpop.f32.mrf.mxu0
        %v847 = vadd.f32 %v695, %v846
        %848 = vmatmul.f32.gmra.mxu0 %v737
        %v849 = vpop.f32.mrf.mxu0
        %v850 = vadd.f32 %v695, %v849
        %851 = vmatmul.f32.gmra.mxu0 %v740
        %v852 = vpop.f32.mrf.mxu0
        %v853 = vadd.f32 %v695, %v852
        %854 = vmatmul.f32.gmra.mxu0 %v743
        %v855 = vpop.f32.mrf.mxu0
        %v856 = vadd.f32 %v695, %v855
        %857 = vmatmul.f32.gmra.mxu0 %v746
        %v858 = vpop.f32.mrf.mxu0
        %v859 = vadd.f32 %v695, %v858
        %860 = vmatmul.f32.gmra.mxu0 %v749
        %v861 = vpop.f32.mrf.mxu0
        %v862 = vadd.f32 %v695, %v861
        %863 = vmatmul.f32.gmra.mxu0 %v752
        %v864 = vpop.f32.mrf.mxu0
        %v865 = vadd.f32 %v695, %v864
        %866 = vmatmul.f32.gmra.mxu0 %v755
        %v867 = vpop.f32.mrf.mxu0
        %v868 = vadd.f32 %v695, %v867
        %869 = vmatmul.f32.gmra.mxu0 %v758
        %v870 = vpop.f32.mrf.mxu0
        %v871 = vadd.f32 %v695, %v870
        %872 = vmatmul.f32.gmra.mxu0 %v761
        %v873 = vpop.f32.mrf.mxu0
        %v874 = vadd.f32 %v695, %v873
        %875 = vmatmul.f32.gmra.mxu0 %v764
        %v876 = vpop.f32.mrf.mxu0
        %v877 = vadd.f32 %v695, %v876
        %878 = vmatmul.f32.gmra.mxu0 %v767
        %v879 = vpop.f32.mrf.mxu0
        %v880 = vadd.f32 %v695, %v879
        %881 = vmatmul.f32.gmra.mxu0 %v770
        %v882 = vpop.f32.mrf.mxu0
        %v883 = vadd.f32 %v695, %v882
        %884 = vmatmul.f32.gmra.mxu0 %v773
        %v885 = vpop.f32.mrf.mxu0
        %v886 = vadd.f32 %v695, %v885
        %887 = vmatmul.f32.gmra.mxu0 %v776
        %v888 = vpop.f32.mrf.mxu0
        %v889 = vadd.f32 %v695, %v888
        %890 = vmatmul.f32.gmra.mxu0 %v779
        %v891 = vpop.f32.mrf.mxu0
        %v892 = vadd.f32 %v695, %v891
        %893 = vmatmul.f32.gmra.mxu0 %v782
        %v894 = vpop.f32.mrf.mxu0
        %v895 = vadd.f32 %v695, %v894
        %896 = vmatmul.f32.gmra.mxu0 %v785
        %v897 = vpop.f32.mrf.mxu0
        %v898 = vadd.f32 %v695, %v897
        %899 = vmatmul.f32.gmra.mxu0 %v788
        %v900 = vpop.f32.mrf.mxu0
        %v901 = vadd.f32 %v695, %v900
        %902 = vmatmul.f32.gmra.mxu0 %v791
        %v903 = vpop.f32.mrf.mxu0
        %v904 = vadd.f32 %v695, %v903
        %905 = vdwg.mxu0
        %v907 = vsel %vm392, %v811, 0
        %v910 = vsel %vm392, %v814, 0
        %v913 = vsel %vm392, %v817, 0
        %v916 = vsel %vm392, %v820, 0
        %v919 = vsel %vm392, %v823, 0
        %v922 = vsel %vm392, %v826, 0
        %v925 = vsel %vm392, %v829, 0
        %v928 = vsel %vm392, %v832, 0
        %v931 = vsel %vm392, %v835, 0
        %v934 = vsel %vm392, %v838, 0
        %v937 = vsel %vm392, %v841, 0
        %v940 = vsel %vm392, %v844, 0
        %v943 = vsel %vm392, %v847, 0
        %v946 = vsel %vm392, %v850, 0
        %v949 = vsel %vm392, %v853, 0
        %v952 = vsel %vm392, %v856, 0
        %v955 = vsel %vm392, %v859, 0
        %v958 = vsel %vm392, %v862, 0
        %v961 = vsel %vm392, %v865, 0
        %v964 = vsel %vm392, %v868, 0
        %v967 = vsel %vm392, %v871, 0
        %v970 = vsel %vm392, %v874, 0
        %v973 = vsel %vm392, %v877, 0
        %v976 = vsel %vm392, %v880, 0
        %v979 = vsel %vm392, %v883, 0
        %v982 = vsel %vm392, %v886, 0
        %v985 = vsel %vm392, %v889, 0
        %v988 = vsel %vm392, %v892, 0
        %v991 = vsel %vm392, %v895, 0
        %v994 = vsel %vm392, %v898, 0
        %v997 = vsel %vm392, %v901, 0
        %v1000 = vsel %vm392, %v904, 0
        %v1003 = vsel %vm405, %v505, 0
        %v1006 = vsel %vm405, %v525, 0
        %1008 = vmatpush.msra.mxu0 0.0
        %1009 = vmatpush.msra.mxu0 0.0
        %1010 = vmatpush.msra.mxu0 0.0
        %1011 = vmatpush.msra.mxu0 0.0
        %1012 = vmatpush.msra.mxu0 0.0
        %1013 = vmatpush.msra.mxu0 0.0
        %1014 = vmatpush.msra.mxu0 0.0
        %1015 = vmatpush.msra.mxu0 0.0
        %1016 = vmatpush.msra.mxu0 0.0
        %1017 = vmatpush.msra.mxu0 0.0
        %1018 = vmatpush.msra.mxu0 0.0
        %1019 = vmatpush.msra.mxu0 0.0
        %1020 = vmatpush.msra.mxu0 0.0
        %1021 = vmatpush.msra.mxu0 0.0
        %1022 = vmatpush.msra.mxu0 0.0
        %1023 = vmatpush.msra.mxu0 %v1003
        %1024 = vmatmul.f32.gmra.mxu0 %v907
        %v1025 = vpop.f32.mrf.mxu0
        %v1026 = vadd.f32 0.0, %v1025
        %1027 = vmatmul.f32.gmra.mxu0 %v910
        %v1028 = vpop.f32.mrf.mxu0
        %v1029 = vadd.f32 0.0, %v1028
        %1030 = vmatmul.f32.gmra.mxu0 %v913
        %v1031 = vpop.f32.mrf.mxu0
        %v1032 = vadd.f32 0.0, %v1031
        %1033 = vmatmul.f32.gmra.mxu0 %v916
        %v1034 = vpop.f32.mrf.mxu0
        %v1035 = vadd.f32 0.0, %v1034
        %1036 = vmatmul.f32.gmra.mxu0 %v919
        %v1037 = vpop.f32.mrf.mxu0
        %v1038 = vadd.f32 0.0, %v1037
        %1039 = vmatmul.f32.gmra.mxu0 %v922
        %v1040 = vpop.f32.mrf.mxu0
        %v1041 = vadd.f32 0.0, %v1040
        %1042 = vmatmul.f32.gmra.mxu0 %v925
        %v1043 = vpop.f32.mrf.mxu0
        %v1044 = vadd.f32 0.0, %v1043
        %1045 = vmatmul.f32.gmra.mxu0 %v928
        %v1046 = vpop.f32.mrf.mxu0
        %v1047 = vadd.f32 0.0, %v1046
        %1048 = vmatmul.f32.gmra.mxu0 %v931
        %v1049 = vpop.f32.mrf.mxu0
        %v1050 = vadd.f32 0.0, %v1049
        %1051 = vmatmul.f32.gmra.mxu0 %v934
        %v1052 = vpop.f32.mrf.mxu0
        %v1053 = vadd.f32 0.0, %v1052
        %1054 = vmatmul.f32.gmra.mxu0 %v937
        %v1055 = vpop.f32.mrf.mxu0
        %v1056 = vadd.f32 0.0, %v1055
        %1057 = vmatmul.f32.gmra.mxu0 %v940
        %v1058 = vpop.f32.mrf.mxu0
        %v1059 = vadd.f32 0.0, %v1058
        %1060 = vmatmul.f32.gmra.mxu0 %v943
        %v1061 = vpop.f32.mrf.mxu0
        %v1062 = vadd.f32 0.0, %v1061
        %1063 = vmatmul.f32.gmra.mxu0 %v946
        %v1064 = vpop.f32.mrf.mxu0
        %v1065 = vadd.f32 0.0, %v1064
        %1066 = vmatmul.f32.gmra.mxu0 %v949
        %v1067 = vpop.f32.mrf.mxu0
        %v1068 = vadd.f32 0.0, %v1067
        %1069 = vmatmul.f32.gmra.mxu0 %v952
        %v1070 = vpop.f32.mrf.mxu0
        %v1071 = vadd.f32 0.0, %v1070
        %1072 = vmatmul.f32.gmra.mxu0 %v955
        %v1073 = vpop.f32.mrf.mxu0
        %v1074 = vadd.f32 0.0, %v1073
        %1075 = vmatmul.f32.gmra.mxu0 %v958
        %v1076 = vpop.f32.mrf.mxu0
        %v1077 = vadd.f32 0.0, %v1076
        %1078 = vmatmul.f32.gmra.mxu0 %v961
        %v1079 = vpop.f32.mrf.mxu0
        %v1080 = vadd.f32 0.0, %v1079
        %1081 = vmatmul.f32.gmra.mxu0 %v964
        %v1082 = vpop.f32.mrf.mxu0
        %v1083 = vadd.f32 0.0, %v1082
        %1084 = vmatmul.f32.gmra.mxu0 %v967
        %v1085 = vpop.f32.mrf.mxu0
        %v1086 = vadd.f32 0.0, %v1085
        %1087 = vmatmul.f32.gmra.mxu0 %v970
        %v1088 = vpop.f32.mrf.mxu0
        %v1089 = vadd.f32 0.0, %v1088
        %1090 = vmatmul.f32.gmra.mxu0 %v973
        %v1091 = vpop.f32.mrf.mxu0
        %v1092 = vadd.f32 0.0, %v1091
        %1093 = vmatmul.f32.gmra.mxu0 %v976
        %v1094 = vpop.f32.mrf.mxu0
        %v1095 = vadd.f32 0.0, %v1094
        %1096 = vmatmul.f32.gmra.mxu0 %v979
        %v1097 = vpop.f32.mrf.mxu0
        %v1098 = vadd.f32 0.0, %v1097
        %1099 = vmatmul.f32.gmra.mxu0 %v982
        %v1100 = vpop.f32.mrf.mxu0
        %v1101 = vadd.f32 0.0, %v1100
        %1102 = vmatmul.f32.gmra.mxu0 %v985
        %v1103 = vpop.f32.mrf.mxu0
        %v1104 = vadd.f32 0.0, %v1103
        %1105 = vmatmul.f32.gmra.mxu0 %v988
        %v1106 = vpop.f32.mrf.mxu0
        %v1107 = vadd.f32 0.0, %v1106
        %1108 = vmatmul.f32.gmra.mxu0 %v991
        %v1109 = vpop.f32.mrf.mxu0
        %v1110 = vadd.f32 0.0, %v1109
        %1111 = vmatmul.f32.gmra.mxu0 %v994
        %v1112 = vpop.f32.mrf.mxu0
        %v1113 = vadd.f32 0.0, %v1112
        %1114 = vmatmul.f32.gmra.mxu0 %v997
        %v1115 = vpop.f32.mrf.mxu0
        %v1116 = vadd.f32 0.0, %v1115
        %1117 = vmatmul.f32.gmra.mxu0 %v1000
        %v1118 = vpop.f32.mrf.mxu0
        %v1119 = vadd.f32 0.0, %v1118
        %1120 = vdwg.mxu0
        %1121 = vmatpush.msra.mxu0 0.0
        %1122 = vmatpush.msra.mxu0 0.0
        %1123 = vmatpush.msra.mxu0 0.0
        %1124 = vmatpush.msra.mxu0 0.0
        %1125 = vmatpush.msra.mxu0 0.0
        %1126 = vmatpush.msra.mxu0 0.0
        %1127 = vmatpush.msra.mxu0 0.0
        %1128 = vmatpush.msra.mxu0 0.0
        %1129 = vmatpush.msra.mxu0 0.0
        %1130 = vmatpush.msra.mxu0 0.0
        %1131 = vmatpush.msra.mxu0 0.0
        %1132 = vmatpush.msra.mxu0 0.0
        %1133 = vmatpush.msra.mxu0 0.0
        %1134 = vmatpush.msra.mxu0 0.0
        %1135 = vmatpush.msra.mxu0 0.0
        %1136 = vmatpush.msra.mxu0 %v1006
        %1137 = vmatmul.f32.gmra.mxu0 %v907
        %v1138 = vpop.f32.mrf.mxu0
        %v1139 = vadd.f32 0.0, %v1138
        %1140 = vmatmul.f32.gmra.mxu0 %v910
        %v1141 = vpop.f32.mrf.mxu0
        %v1142 = vadd.f32 0.0, %v1141
        %1143 = vmatmul.f32.gmra.mxu0 %v913
        %v1144 = vpop.f32.mrf.mxu0
        %v1145 = vadd.f32 0.0, %v1144
        %1146 = vmatmul.f32.gmra.mxu0 %v916
        %v1147 = vpop.f32.mrf.mxu0
        %v1148 = vadd.f32 0.0, %v1147
        %1149 = vmatmul.f32.gmra.mxu0 %v919
        %v1150 = vpop.f32.mrf.mxu0
        %v1151 = vadd.f32 0.0, %v1150
        %1152 = vmatmul.f32.gmra.mxu0 %v922
        %v1153 = vpop.f32.mrf.mxu0
        %v1154 = vadd.f32 0.0, %v1153
        %1155 = vmatmul.f32.gmra.mxu0 %v925
        %v1156 = vpop.f32.mrf.mxu0
        %v1157 = vadd.f32 0.0, %v1156
        %1158 = vmatmul.f32.gmra.mxu0 %v928
        %v1159 = vpop.f32.mrf.mxu0
        %v1160 = vadd.f32 0.0, %v1159
        %1161 = vmatmul.f32.gmra.mxu0 %v931
        %v1162 = vpop.f32.mrf.mxu0
        %v1163 = vadd.f32 0.0, %v1162
        %1164 = vmatmul.f32.gmra.mxu0 %v934
        %v1165 = vpop.f32.mrf.mxu0
        %v1166 = vadd.f32 0.0, %v1165
        %1167 = vmatmul.f32.gmra.mxu0 %v937
        %v1168 = vpop.f32.mrf.mxu0
        %v1169 = vadd.f32 0.0, %v1168
        %1170 = vmatmul.f32.gmra.mxu0 %v940
        %v1171 = vpop.f32.mrf.mxu0
        %v1172 = vadd.f32 0.0, %v1171
        %1173 = vmatmul.f32.gmra.mxu0 %v943
        %v1174 = vpop.f32.mrf.mxu0
        %v1175 = vadd.f32 0.0, %v1174
        %1176 = vmatmul.f32.gmra.mxu0 %v946
        %v1177 = vpop.f32.mrf.mxu0
        %v1178 = vadd.f32 0.0, %v1177
        %1179 = vmatmul.f32.gmra.mxu0 %v949
        %v1180 = vpop.f32.mrf.mxu0
        %v1181 = vadd.f32 0.0, %v1180
        %1182 = vmatmul.f32.gmra.mxu0 %v952
        %v1183 = vpop.f32.mrf.mxu0
        %v1184 = vadd.f32 0.0, %v1183
        %1185 = vmatmul.f32.gmra.mxu0 %v955
        %v1186 = vpop.f32.mrf.mxu0
        %v1187 = vadd.f32 0.0, %v1186
        %1188 = vmatmul.f32.gmra.mxu0 %v958
        %v1189 = vpop.f32.mrf.mxu0
        %v1190 = vadd.f32 0.0, %v1189
        %1191 = vmatmul.f32.gmra.mxu0 %v961
        %v1192 = vpop.f32.mrf.mxu0
        %v1193 = vadd.f32 0.0, %v1192
        %1194 = vmatmul.f32.gmra.mxu0 %v964
        %v1195 = vpop.f32.mrf.mxu0
        %v1196 = vadd.f32 0.0, %v1195
        %1197 = vmatmul.f32.gmra.mxu0 %v967
        %v1198 = vpop.f32.mrf.mxu0
        %v1199 = vadd.f32 0.0, %v1198
        %1200 = vmatmul.f32.gmra.mxu0 %v970
        %v1201 = vpop.f32.mrf.mxu0
        %v1202 = vadd.f32 0.0, %v1201
        %1203 = vmatmul.f32.gmra.mxu0 %v973
        %v1204 = vpop.f32.mrf.mxu0
        %v1205 = vadd.f32 0.0, %v1204
        %1206 = vmatmul.f32.gmra.mxu0 %v976
        %v1207 = vpop.f32.mrf.mxu0
        %v1208 = vadd.f32 0.0, %v1207
        %1209 = vmatmul.f32.gmra.mxu0 %v979
        %v1210 = vpop.f32.mrf.mxu0
        %v1211 = vadd.f32 0.0, %v1210
        %1212 = vmatmul.f32.gmra.mxu0 %v982
        %v1213 = vpop.f32.mrf.mxu0
        %v1214 = vadd.f32 0.0, %v1213
        %1215 = vmatmul.f32.gmra.mxu0 %v985
        %v1216 = vpop.f32.mrf.mxu0
        %v1217 = vadd.f32 0.0, %v1216
        %1218 = vmatmul.f32.gmra.mxu0 %v988
        %v1219 = vpop.f32.mrf.mxu0
        %v1220 = vadd.f32 0.0, %v1219
        %1221 = vmatmul.f32.gmra.mxu0 %v991
        %v1222 = vpop.f32.mrf.mxu0
        %v1223 = vadd.f32 0.0, %v1222
        %1224 = vmatmul.f32.gmra.mxu0 %v994
        %v1225 = vpop.f32.mrf.mxu0
        %v1226 = vadd.f32 0.0, %v1225
        %1227 = vmatmul.f32.gmra.mxu0 %v997
        %v1228 = vpop.f32.mrf.mxu0
        %v1229 = vadd.f32 0.0, %v1228
        %1230 = vmatmul.f32.gmra.mxu0 %v1000
        %v1231 = vpop.f32.mrf.mxu0
        %v1232 = vadd.f32 0.0, %v1231
        %1233 = vdwg.mxu0
        %v1234 = vmax.f32 %v1026, %v1032
        %v1235 = vmax.f32 %v1029, %v1035
        %v1236 = vmax.f32 %v1234, %v1038
        %v1237 = vmax.f32 %v1235, %v1041
        %v1238 = vmax.f32 %v1236, %v1044
        %v1239 = vmax.f32 %v1237, %v1047
        %v1240 = vmax.f32 %v1238, %v1050
        %v1241 = vmax.f32 %v1239, %v1053
        %v1242 = vmax.f32 %v1240, %v1056
        %v1243 = vmax.f32 %v1241, %v1059
        %v1244 = vmax.f32 %v1242, %v1062
        %v1245 = vmax.f32 %v1243, %v1065
        %v1246 = vmax.f32 %v1244, %v1068
        %v1247 = vmax.f32 %v1245, %v1071
        %v1248 = vmax.f32 %v1246, %v1074
        %v1249 = vmax.f32 %v1247, %v1077
        %v1250 = vmax.f32 %v1248, %v1080
        %v1251 = vmax.f32 %v1249, %v1083
        %v1252 = vmax.f32 %v1250, %v1086
        %v1253 = vmax.f32 %v1251, %v1089
        %v1254 = vmax.f32 %v1252, %v1092
        %v1255 = vmax.f32 %v1253, %v1095
        %v1256 = vmax.f32 %v1254, %v1098
        %v1257 = vmax.f32 %v1255, %v1101
        %v1258 = vmax.f32 %v1256, %v1104
        %v1259 = vmax.f32 %v1257, %v1107
        %v1260 = vmax.f32 %v1258, %v1110
        %v1261 = vmax.f32 %v1259, %v1113
        %v1262 = vmax.f32 %v1260, %v1116
        %v1263 = vmax.f32 %v1261, %v1119
        %v1264 = vmax.f32 %v1262, %v1263
        %v1265 = vrot.slane %v1264, 4
        %v1266 = vmax.f32 %v1264, %v1265
        %v1267 = vrot.slane %v1266, 2
        %v1268 = vmax.f32 %v1266, %v1267
        %v1269 = vrot.slane %v1268, 1
        %v1270 = vmax.f32 %v1268, %v1269
        %v1271 = vmax.f32 %v1139, %v1145
        %v1272 = vmax.f32 %v1142, %v1148
        %v1273 = vmax.f32 %v1271, %v1151
        %v1274 = vmax.f32 %v1272, %v1154
        %v1275 = vmax.f32 %v1273, %v1157
        %v1276 = vmax.f32 %v1274, %v1160
        %v1277 = vmax.f32 %v1275, %v1163
        %v1278 = vmax.f32 %v1276, %v1166
        %v1279 = vmax.f32 %v1277, %v1169
        %v1280 = vmax.f32 %v1278, %v1172
        %v1281 = vmax.f32 %v1279, %v1175
        %v1282 = vmax.f32 %v1280, %v1178
        %v1283 = vmax.f32 %v1281, %v1181
        %v1284 = vmax.f32 %v1282, %v1184
        %v1285 = vmax.f32 %v1283, %v1187
        %v1286 = vmax.f32 %v1284, %v1190
        %v1287 = vmax.f32 %v1285, %v1193
        %v1288 = vmax.f32 %v1286, %v1196
        %v1289 = vmax.f32 %v1287, %v1199
        %v1290 = vmax.f32 %v1288, %v1202
        %v1291 = vmax.f32 %v1289, %v1205
        %v1292 = vmax.f32 %v1290, %v1208
        %v1293 = vmax.f32 %v1291, %v1211
        %v1294 = vmax.f32 %v1292, %v1214
        %v1295 = vmax.f32 %v1293, %v1217
        %v1296 = vmax.f32 %v1294, %v1220
        %v1297 = vmax.f32 %v1295, %v1223
        %v1298 = vmax.f32 %v1296, %v1226
        %v1299 = vmax.f32 %v1297, %v1229
        %v1300 = vmax.f32 %v1298, %v1232
        %v1301 = vmax.f32 %v1299, %v1300
        %v1302 = vrot.slane %v1301, 4
        %v1303 = vmax.f32 %v1301, %v1302
        %v1304 = vrot.slane %v1303, 2
        %v1305 = vmax.f32 %v1303, %v1304
        %v1306 = vrot.slane %v1305, 1
        %v1307 = vmax.f32 %v1305, %v1306
        %v1308 = vsub.f32 %v1026, %v1270
        %v1309 = vsub.f32 %v1139, %v1307
        %v1310 = vsub.f32 %v1029, %v1270
        %v1311 = vsub.f32 %v1142, %v1307
        %v1312 = vsub.f32 %v1032, %v1270
        %v1313 = vsub.f32 %v1145, %v1307
        %v1314 = vsub.f32 %v1035, %v1270
        %v1315 = vsub.f32 %v1148, %v1307
        %v1316 = vsub.f32 %v1038, %v1270
        %v1317 = vsub.f32 %v1151, %v1307
        %v1318 = vsub.f32 %v1041, %v1270
        %v1319 = vsub.f32 %v1154, %v1307
        %v1320 = vsub.f32 %v1044, %v1270
        %v1321 = vsub.f32 %v1157, %v1307
        %v1322 = vsub.f32 %v1047, %v1270
        %v1323 = vsub.f32 %v1160, %v1307
        %v1324 = vsub.f32 %v1050, %v1270
        %v1325 = vsub.f32 %v1163, %v1307
        %v1326 = vsub.f32 %v1053, %v1270
        %v1327 = vsub.f32 %v1166, %v1307
        %v1328 = vsub.f32 %v1056, %v1270
        %v1329 = vsub.f32 %v1169, %v1307
        %v1330 = vsub.f32 %v1059, %v1270
        %v1331 = vsub.f32 %v1172, %v1307
        %v1332 = vsub.f32 %v1062, %v1270
        %v1333 = vsub.f32 %v1175, %v1307
        %v1334 = vsub.f32 %v1065, %v1270
        %v1335 = vsub.f32 %v1178, %v1307
        %v1336 = vsub.f32 %v1068, %v1270
        %v1337 = vsub.f32 %v1181, %v1307
        %v1338 = vsub.f32 %v1071, %v1270
        %v1339 = vsub.f32 %v1184, %v1307
        %v1340 = vsub.f32 %v1074, %v1270
        %v1341 = vsub.f32 %v1187, %v1307
        %v1342 = vsub.f32 %v1077, %v1270
        %v1343 = vsub.f32 %v1190, %v1307
        %v1344 = vsub.f32 %v1080, %v1270
        %v1345 = vsub.f32 %v1193, %v1307
        %v1346 = vsub.f32 %v1083, %v1270
        %v1347 = vsub.f32 %v1196, %v1307
        %v1348 = vsub.f32 %v1086, %v1270
        %v1349 = vsub.f32 %v1199, %v1307
        %v1350 = vsub.f32 %v1089, %v1270
        %v1351 = vsub.f32 %v1202, %v1307
        %v1352 = vsub.f32 %v1092, %v1270
        %v1353 = vsub.f32 %v1205, %v1307
        %v1354 = vsub.f32 %v1095, %v1270
        %v1355 = vsub.f32 %v1208, %v1307
        %v1356 = vsub.f32 %v1098, %v1270
        %v1357 = vsub.f32 %v1211, %v1307
        %v1358 = vsub.f32 %v1101, %v1270
        %v1359 = vsub.f32 %v1214, %v1307
        %v1360 = vsub.f32 %v1104, %v1270
        %v1361 = vsub.f32 %v1217, %v1307
        %v1362 = vsub.f32 %v1107, %v1270
        %v1363 = vsub.f32 %v1220, %v1307
        %v1364 = vsub.f32 %v1110, %v1270
        %v1365 = vsub.f32 %v1223, %v1307
        %v1366 = vsub.f32 %v1113, %v1270
        %v1367 = vsub.f32 %v1226, %v1307
        %v1368 = vsub.f32 %v1116, %v1270
        %v1369 = vsub.f32 %v1229, %v1307
        %v1370 = vsub.f32 %v1119, %v1270
        %v1371 = vsub.f32 %v1232, %v1307
        %v1372 = vmul.f32 %v1308, 1.442695
        %v1373 = vpow.pop %v1372
        %v1374 = vmul.f32 %v1309, 1.442695
        %v1375 = vpow.pop %v1374
        %v1376 = vmul.f32 %v1310, 1.442695
        %v1377 = vpow.pop %v1376
        %v1378 = vmul.f32 %v1311, 1.442695
        %v1379 = vpow.pop %v1378
        %v1380 = vmul.f32 %v1312, 1.442695
        %v1381 = vpow.pop %v1380
        %v1382 = vmul.f32 %v1313, 1.442695
        %v1383 = vpow.pop %v1382
        %v1384 = vmul.f32 %v1314, 1.442695
        %v1385 = vpow.pop %v1384
        %v1386 = vmul.f32 %v1315, 1.442695
        %v1387 = vpow.pop %v1386
        %v1388 = vmul.f32 %v1316, 1.442695
        %v1389 = vpow.pop %v1388
        %v1390 = vmul.f32 %v1317, 1.442695
        %v1391 = vpow.pop %v1390
        %v1392 = vmul.f32 %v1318, 1.442695
        %v1393 = vpow.pop %v1392
        %v1394 = vmul.f32 %v1319, 1.442695
        %v1395 = vpow.pop %v1394
        %v1396 = vmul.f32 %v1320, 1.442695
        %v1397 = vpow.pop %v1396
        %v1398 = vmul.f32 %v1321, 1.442695
        %v1399 = vpow.pop %v1398
        %v1400 = vmul.f32 %v1322, 1.442695
        %v1401 = vpow.pop %v1400
        %v1402 = vmul.f32 %v1323, 1.442695
        %v1403 = vpow.pop %v1402
        %v1404 = vmul.f32 %v1324, 1.442695
        %v1405 = vpow.pop %v1404
        %v1406 = vmul.f32 %v1325, 1.442695
        %v1407 = vpow.pop %v1406
        %v1408 = vmul.f32 %v1326, 1.442695
        %v1409 = vpow.pop %v1408
        %v1410 = vmul.f32 %v1327, 1.442695
        %v1411 = vpow.pop %v1410
        %v1412 = vmul.f32 %v1328, 1.442695
        %v1413 = vpow.pop %v1412
        %v1414 = vmul.f32 %v1329, 1.442695
        %v1415 = vpow.pop %v1414
        %v1416 = vmul.f32 %v1330, 1.442695
        %v1417 = vpow.pop %v1416
        %v1418 = vmul.f32 %v1331, 1.442695
        %v1419 = vpow.pop %v1418
        %v1420 = vmul.f32 %v1332, 1.442695
        %v1421 = vpow.pop %v1420
        %v1422 = vmul.f32 %v1333, 1.442695
        %v1423 = vpow.pop %v1422
        %v1424 = vmul.f32 %v1334, 1.442695
        %v1425 = vpow.pop %v1424
        %v1426 = vmul.f32 %v1335, 1.442695
        %v1427 = vpow.pop %v1426
        %v1428 = vmul.f32 %v1336, 1.442695
        %v1429 = vpow.pop %v1428
        %v1430 = vmul.f32 %v1337, 1.442695
        %v1431 = vpow.pop %v1430
        %v1432 = vmul.f32 %v1338, 1.442695
        %v1433 = vpow.pop %v1432
        %v1434 = vmul.f32 %v1339, 1.442695
        %v1435 = vpow.pop %v1434
        %v1436 = vmul.f32 %v1340, 1.442695
        %v1437 = vpow.pop %v1436
        %v1438 = vmul.f32 %v1341, 1.442695
        %v1439 = vpow.pop %v1438
        %v1440 = vmul.f32 %v1342, 1.442695
        %v1441 = vpow.pop %v1440
        %v1442 = vmul.f32 %v1343, 1.442695
        %v1443 = vpow.pop %v1442
        %v1444 = vmul.f32 %v1344, 1.442695
        %v1445 = vpow.pop %v1444
        %v1446 = vmul.f32 %v1345, 1.442695
        %v1447 = vpow.pop %v1446
        %v1448 = vmul.f32 %v1346, 1.442695
        %v1449 = vpow.pop %v1448
        %v1450 = vmul.f32 %v1347, 1.442695
        %v1451 = vpow.pop %v1450
        %v1452 = vmul.f32 %v1348, 1.442695
        %v1453 = vpow.pop %v1452
        %v1454 = vmul.f32 %v1349, 1.442695
        %v1455 = vpow.pop %v1454
        %v1456 = vmul.f32 %v1350, 1.442695
        %v1457 = vpow.pop %v1456
        %v1458 = vmul.f32 %v1351, 1.442695
        %v1459 = vpow.pop %v1458
        %v1460 = vmul.f32 %v1352, 1.442695
        %v1461 = vpow.pop %v1460
        %v1462 = vmul.f32 %v1353, 1.442695
        %v1463 = vpow.pop %v1462
        %v1464 = vmul.f32 %v1354, 1.442695
        %v1465 = vpow.pop %v1464
        %v1466 = vmul.f32 %v1355, 1.442695
        %v1467 = vpow.pop %v1466
        %v1468 = vmul.f32 %v1356, 1.442695
        %v1469 = vpow.pop %v1468
        %v1470 = vmul.f32 %v1357, 1.442695
        %v1471 = vpow.pop %v1470
        %v1472 = vmul.f32 %v1358, 1.442695
        %v1473 = vpow.pop %v1472
        %v1474 = vmul.f32 %v1359, 1.442695
        %v1475 = vpow.pop %v1474
        %v1476 = vmul.f32 %v1360, 1.442695
        %v1477 = vpow.pop %v1476
        %v1478 = vmul.f32 %v1361, 1.442695
        %v1479 = vpow.pop %v1478
        %v1480 = vmul.f32 %v1362, 1.442695
        %v1481 = vpow.pop %v1480
        %v1482 = vmul.f32 %v1363, 1.442695
        %v1483 = vpow.pop %v1482
        %v1484 = vmul.f32 %v1364, 1.442695
        %v1485 = vpow.pop %v1484
        %v1486 = vmul.f32 %v1365, 1.442695
        %v1487 = vpow.pop %v1486
        %v1488 = vmul.f32 %v1366, 1.442695
        %v1489 = vpow.pop %v1488
        %v1490 = vmul.f32 %v1367, 1.442695
        %v1491 = vpow.pop %v1490
        %v1492 = vmul.f32 %v1368, 1.442695
        %v1493 = vpow.pop %v1492
        %v1494 = vmul.f32 %v1369, 1.442695
        %v1495 = vpow.pop %v1494
        %v1496 = vmul.f32 %v1370, 1.442695
        %v1497 = vpow.pop %v1496
        %v1498 = vmul.f32 %v1371, 1.442695
        %v1499 = vpow.pop %v1498
        %v1500 = vadd.f32 %v1373, %v1377
        %v1501 = vadd.f32 %v1500, %v1381
        %v1502 = vadd.f32 %v1501, %v1385
        %v1503 = vadd.f32 %v1502, %v1389
        %v1504 = vadd.f32 %v1503, %v1393
        %v1505 = vadd.f32 %v1504, %v1397
        %v1506 = vadd.f32 %v1505, %v1401
        %v1507 = vadd.f32 %v1506, %v1405
        %v1508 = vadd.f32 %v1507, %v1409
        %v1509 = vadd.f32 %v1508, %v1413
        %v1510 = vadd.f32 %v1509, %v1417
        %v1511 = vadd.f32 %v1510, %v1421
        %v1512 = vadd.f32 %v1511, %v1425
        %v1513 = vadd.f32 %v1512, %v1429
        %v1514 = vadd.f32 %v1513, %v1433
        %v1515 = vadd.f32 %v1514, %v1437
        %v1516 = vadd.f32 %v1515, %v1441
        %v1517 = vadd.f32 %v1516, %v1445
        %v1518 = vadd.f32 %v1517, %v1449
        %v1519 = vadd.f32 %v1518, %v1453
        %v1520 = vadd.f32 %v1519, %v1457
        %v1521 = vadd.f32 %v1520, %v1461
        %v1522 = vadd.f32 %v1521, %v1465
        %v1523 = vadd.f32 %v1522, %v1469
        %v1524 = vadd.f32 %v1523, %v1473
        %v1525 = vadd.f32 %v1524, %v1477
        %v1526 = vadd.f32 %v1525, %v1481
        %v1527 = vadd.f32 %v1526, %v1485
        %v1528 = vadd.f32 %v1527, %v1489
        %v1529 = vadd.f32 %v1528, %v1493
        %v1530 = vadd.f32 %v1529, %v1497
        %v1531 = vrot.slane %v1530, 4
        %v1532 = vadd.f32 %v1530, %v1531
        %v1533 = vrot.slane %v1532, 2
        %v1534 = vadd.f32 %v1532, %v1533
        %v1535 = vrot.slane %v1534, 1
        %v1536 = vadd.f32 %v1534, %v1535
        %v1537 = vadd.f32 %v1375, %v1379
        %v1538 = vadd.f32 %v1537, %v1383
        %v1539 = vadd.f32 %v1538, %v1387
        %v1540 = vadd.f32 %v1539, %v1391
        %v1541 = vadd.f32 %v1540, %v1395
        %v1542 = vadd.f32 %v1541, %v1399
        %v1543 = vadd.f32 %v1542, %v1403
        %v1544 = vadd.f32 %v1543, %v1407
        %v1545 = vadd.f32 %v1544, %v1411
        %v1546 = vadd.f32 %v1545, %v1415
        %v1547 = vadd.f32 %v1546, %v1419
        %v1548 = vadd.f32 %v1547, %v1423
        %v1549 = vadd.f32 %v1548, %v1427
        %v1550 = vadd.f32 %v1549, %v1431
        %v1551 = vadd.f32 %v1550, %v1435
        %v1552 = vadd.f32 %v1551, %v1439
        %v1553 = vadd.f32 %v1552, %v1443
        %v1554 = vadd.f32 %v1553, %v1447
        %v1555 = vadd.f32 %v1554, %v1451
        %v1556 = vadd.f32 %v1555, %v1455
        %v1557 = vadd.f32 %v1556, %v1459
        %v1558 = vadd.f32 %v1557, %v1463
        %v1559 = vadd.f32 %v1558, %v1467
        %v1560 = vadd.f32 %v1559, %v1471
        %v1561 = vadd.f32 %v1560, %v1475
        %v1562 = vadd.f32 %v1561, %v1479
        %v1563 = vadd.f32 %v1562, %v1483
        %v1564 = vadd.f32 %v1563, %v1487
        %v1565 = vadd.f32 %v1564, %v1491
        %v1566 = vadd.f32 %v1565, %v1495
        %v1567 = vadd.f32 %v1566, %v1499
        %v1568 = vrot.slane %v1567, 4
        %v1569 = vadd.f32 %v1567, %v1568
        %v1570 = vrot.slane %v1569, 2
        %v1571 = vadd.f32 %v1569, %v1570
        %v1572 = vrot.slane %v1571, 1
        %v1573 = vadd.f32 %v1571, %v1572
        %1574 = vmatpush.msra.mxu0 %v1433
        %1575 = vmatpush.msra.mxu0 %v1429
        %1576 = vmatpush.msra.mxu0 %v1425
        %1577 = vmatpush.msra.mxu0 %v1421
        %1578 = vmatpush.msra.mxu0 %v1417
        %1579 = vmatpush.msra.mxu0 %v1413
        %1580 = vmatpush.msra.mxu0 %v1409
        %1581 = vmatpush.msra.mxu0 %v1405
        %1582 = vmatpush.msra.mxu0 %v1401
        %1583 = vmatpush.msra.mxu0 %v1397
        %1584 = vmatpush.msra.mxu0 %v1393
        %1585 = vmatpush.msra.mxu0 %v1389
        %1586 = vmatpush.msra.mxu0 %v1385
        %1587 = vmatpush.msra.mxu0 %v1381
        %1588 = vmatpush.msra.mxu0 %v1377
        %1589 = vmatpush.msra.mxu0 %v1373
        %1590 = vmatmul.f32.gmra.mxu0 %v585
        %v1591 = vpop.f32.mrf.mxu0
        %v1592 = vadd.f32 0.0, %v1591
        %1593 = vmatmul.f32.gmra.mxu0 %v588
        %v1594 = vpop.f32.mrf.mxu0
        %v1595 = vadd.f32 0.0, %v1594
        %1596 = vmatmul.f32.gmra.mxu0 %v591
        %v1597 = vpop.f32.mrf.mxu0
        %v1598 = vadd.f32 0.0, %v1597
        %1599 = vmatmul.f32.gmra.mxu0 %v594
        %v1600 = vpop.f32.mrf.mxu0
        %v1601 = vadd.f32 0.0, %v1600
        %1602 = vdwg.mxu0
        %1603 = vmatpush.msra.mxu0 %v1497
        %1604 = vmatpush.msra.mxu0 %v1493
        %1605 = vmatpush.msra.mxu0 %v1489
        %1606 = vmatpush.msra.mxu0 %v1485
        %1607 = vmatpush.msra.mxu0 %v1481
        %1608 = vmatpush.msra.mxu0 %v1477
        %1609 = vmatpush.msra.mxu0 %v1473
        %1610 = vmatpush.msra.mxu0 %v1469
        %1611 = vmatpush.msra.mxu0 %v1465
        %1612 = vmatpush.msra.mxu0 %v1461
        %1613 = vmatpush.msra.mxu0 %v1457
        %1614 = vmatpush.msra.mxu0 %v1453
        %1615 = vmatpush.msra.mxu0 %v1449
        %1616 = vmatpush.msra.mxu0 %v1445
        %1617 = vmatpush.msra.mxu0 %v1441
        %1618 = vmatpush.msra.mxu0 %v1437
        %1619 = vmatmul.f32.gmra.mxu0 %v614
        %v1620 = vpop.f32.mrf.mxu0
        %v1621 = vadd.f32 %v1592, %v1620
        %1622 = vmatmul.f32.gmra.mxu0 %v617
        %v1623 = vpop.f32.mrf.mxu0
        %v1624 = vadd.f32 %v1595, %v1623
        %1625 = vmatmul.f32.gmra.mxu0 %v620
        %v1626 = vpop.f32.mrf.mxu0
        %v1627 = vadd.f32 %v1598, %v1626
        %1628 = vmatmul.f32.gmra.mxu0 %v623
        %v1629 = vpop.f32.mrf.mxu0
        %v1630 = vadd.f32 %v1601, %v1629
        %1631 = vdwg.mxu0
        %1632 = vmatpush.msra.mxu0 %v1435
        %1633 = vmatpush.msra.mxu0 %v1431
        %1634 = vmatpush.msra.mxu0 %v1427
        %1635 = vmatpush.msra.mxu0 %v1423
        %1636 = vmatpush.msra.mxu0 %v1419
        %1637 = vmatpush.msra.mxu0 %v1415
        %1638 = vmatpush.msra.mxu0 %v1411
        %1639 = vmatpush.msra.mxu0 %v1407
        %1640 = vmatpush.msra.mxu0 %v1403
        %1641 = vmatpush.msra.mxu0 %v1399
        %1642 = vmatpush.msra.mxu0 %v1395
        %1643 = vmatpush.msra.mxu0 %v1391
        %1644 = vmatpush.msra.mxu0 %v1387
        %1645 = vmatpush.msra.mxu0 %v1383
        %1646 = vmatpush.msra.mxu0 %v1379
        %1647 = vmatpush.msra.mxu0 %v1375
        %1648 = vmatmul.f32.gmra.mxu0 %v585
        %v1649 = vpop.f32.mrf.mxu0
        %v1650 = vadd.f32 0.0, %v1649
        %1651 = vmatmul.f32.gmra.mxu0 %v588
        %v1652 = vpop.f32.mrf.mxu0
        %v1653 = vadd.f32 0.0, %v1652
        %1654 = vmatmul.f32.gmra.mxu0 %v591
        %v1655 = vpop.f32.mrf.mxu0
        %v1656 = vadd.f32 0.0, %v1655
        %1657 = vmatmul.f32.gmra.mxu0 %v594
        %v1658 = vpop.f32.mrf.mxu0
        %v1659 = vadd.f32 0.0, %v1658
        %1660 = vdwg.mxu0
        %1661 = vmatpush.msra.mxu0 %v1499
        %1662 = vmatpush.msra.mxu0 %v1495
        %1663 = vmatpush.msra.mxu0 %v1491
        %1664 = vmatpush.msra.mxu0 %v1487
        %1665 = vmatpush.msra.mxu0 %v1483
        %1666 = vmatpush.msra.mxu0 %v1479
        %1667 = vmatpush.msra.mxu0 %v1475
        %1668 = vmatpush.msra.mxu0 %v1471
        %1669 = vmatpush.msra.mxu0 %v1467
        %1670 = vmatpush.msra.mxu0 %v1463
        %1671 = vmatpush.msra.mxu0 %v1459
        %1672 = vmatpush.msra.mxu0 %v1455
        %1673 = vmatpush.msra.mxu0 %v1451
        %1674 = vmatpush.msra.mxu0 %v1447
        %1675 = vmatpush.msra.mxu0 %v1443
        %1676 = vmatpush.msra.mxu0 %v1439
        %1677 = vmatmul.f32.gmra.mxu0 %v614
        %v1678 = vpop.f32.mrf.mxu0
        %v1679 = vadd.f32 %v1650, %v1678
        %1680 = vmatmul.f32.gmra.mxu0 %v617
        %v1681 = vpop.f32.mrf.mxu0
        %v1682 = vadd.f32 %v1653, %v1681
        %1683 = vmatmul.f32.gmra.mxu0 %v620
        %v1684 = vpop.f32.mrf.mxu0
        %v1685 = vadd.f32 %v1656, %v1684
        %1686 = vmatmul.f32.gmra.mxu0 %v623
        %v1687 = vpop.f32.mrf.mxu0
        %v1688 = vadd.f32 %v1659, %v1687
        %1689 = vdwg.mxu0
        %s1690 = sld [smem:[#allocation2]]
        %v1691 = vstv %s1690
        %v1692 = vrcp.pop %v1536
        %v1693 = vmul.f32 %v1536, %v1692
        %v1694 = vsub.f32 1.0, %v1693
        %v1695 = vmul.f32 %v1692, %v1694
        %v1696 = vadd.f32 %v1692, %v1695
        %vm1697 = vweird.f32 %v1536
        %vm1698 = vweird.f32 %v1692
        %vm1699 = vmor %vm1697, %vm1698
        %v1700 = vsel %vm1699, %v1692, %v1696
        %v1701 = vand.u32 2147483647, %v1536
        %vm1702 = vcmp.eq.f32.partialorder %v1701, 8.507059e+37
        %v1703 = vand.u32 %v1536, 2147483648
        %v1704 = vor.u32 1.1754944e-38, %v1703
        %v1705 = vsel %vm1702, %v1704, %v1700
        %v1706 = vmul.f32 %v1691, %v1705
        %v1707 = vrcp.pop %v1573
        %v1708 = vmul.f32 %v1573, %v1707
        %v1709 = vsub.f32 1.0, %v1708
        %v1710 = vmul.f32 %v1707, %v1709
        %v1711 = vadd.f32 %v1707, %v1710
        %vm1712 = vweird.f32 %v1573
        %vm1713 = vweird.f32 %v1707
        %vm1714 = vmor %vm1712, %vm1713
        %v1715 = vsel %vm1714, %v1707, %v1711
        %v1716 = vand.u32 2147483647, %v1573
        %vm1717 = vcmp.eq.f32.partialorder %v1716, 8.507059e+37
        %v1718 = vand.u32 %v1573, 2147483648
        %v1719 = vor.u32 1.1754944e-38, %v1718
        %v1720 = vsel %vm1717, %v1719, %v1715
        %v1721 = vmul.f32 %v1691, %v1720
        %v1722 = vmul.f32 %v1621, %v1706
        %v1723 = vmul.f32 %v1679, %v1721
        %v1724 = vmul.f32 %v1624, %v1706
        %v1725 = vmul.f32 %v1682, %v1721
        %v1726 = vmul.f32 %v1627, %v1706
        %v1727 = vmul.f32 %v1685, %v1721
        %v1728 = vmul.f32 %v1630, %v1706
        %v1729 = vmul.f32 %v1688, %v1721
        %v1730 = vmul.f32 %v1722, %v468
        %v1731 = vmul.f32 %v1723, %v469
        %v1732 = vmul.f32 %v1724, %v470
        %v1733 = vmul.f32 %v1725, %v471
        %v1734 = vmul.f32 %v1726, %v472
        %v1735 = vmul.f32 %v1727, %v473
        %v1736 = vmul.f32 %v1728, %v474
        %v1737 = vmul.f32 %v1729, %v475
        %1738 = vst [vmem:[%s353] sm:$0xff] %v1730
        %1739 = vst [vmem:[%s353 + $0x8] sm:$0xff] %v1731
        %1740 = vst [vmem:[%s353 + $0x10] sm:$0xff] %v1732
        %1741 = vst [vmem:[%s353 + $0x18] sm:$0xff] %v1733
        %1742 = vst [vmem:[%s353 + $0x20] sm:$0xff] %v1734
        %1743 = vst [vmem:[%s353 + $0x28] sm:$0xff] %v1735
        %1744 = vst [vmem:[%s353 + $0x30] sm:$0xff] %v1736
        %1745 = vst [vmem:[%s353 + $0x38] sm:$0xff] %v1737
        %s1746 = sand.u32 %s248, 1
        %s1747 = scalar_lea.sflag [#allocation4], %s1746
        %s1748 = sand.u32 %s248, 1
        %s1749 = smul.addr %s1748, 64
        %s1750 = scalar_lea.vmem [#allocation3], %s1749
        // Predicated region
        $region61: #{tpu_custom_call.1} parent=59 // pred_check
          %p1751 = pneg %p258
        $region62: #{tpu_custom_call.1} parent=59 // pred_check_branch
          %1753 = sbr.rel (%p1751) target = $region64
        $region63: #{tpu_custom_call.1} parent=59 // pred_region
          %1755 = vsyncadd %s1747, 0
          %s1756 = smul.addr %s25, 8
          %s1757 = smul.addr %s1756, 8
          %s1758 = scalar_lea.hbm %s10, %s1757
          %s1759 = sshll.u32 %s1750, 4
          %s1760 = int_to_ptr.vmem [resolvable:$true] %s1759
          %s1761 = sshll.u32 %s1758, 4
          %s1762 = int_to_ptr.hbm [resolvable:$true] %s1761
          %1767 = dma.vmem_to_hbm [thread:$0]  %s1760, 1024, %s1762, %s1747, 256, 256, 16
        $region64: #{tpu_custom_call.1} parent=59 // pred_fallthru
          _
      $region60: #{tpu_custom_call.1} parent=5 // pred_fallthru
        _
      %p1768 = scmp.le.s32.totalorder 2, %s20
      // Predicated region
      $region65: #{tpu_custom_call.1} parent=5 // pred_check
        %p1769 = pneg %p1768
      $region66: #{tpu_custom_call.1} parent=5 // pred_check_branch
        %1771 = sbr.rel (%p1769) target = $region68
      $region67: #{tpu_custom_call.1} parent=5 // pred_region
        %s1772 = ssub.s32 %s20, 2
        // Predicated region
        $region69: #{tpu_custom_call.1} parent=67 // pred_check
          %p1773 = pneg %p264
        $region70: #{tpu_custom_call.1} parent=67 // pred_check_branch
          %1775 = sbr.rel (%p1773) target = $region72
        $region71: #{tpu_custom_call.1} parent=67 // pred_region
          %s1776 = sand.u32 %s249, 1
          %s1777 = scalar_lea.sflag [#allocation4], %s1776
          %s1778 = sand.u32 %s249, 1
          %s1779 = smul.addr %s1778, 64
          %s1780 = scalar_lea.vmem [#allocation3], %s1779
          %1782 = dma.done %s1777, 1024
        $region72: #{tpu_custom_call.1} parent=67 // pred_fallthru
          _
      $region68: #{tpu_custom_call.1} parent=5 // pred_fallthru
        _
    $region6: #{tpu_custom_call.1} parent=1 // loop_footer
      %s24 = sadd.s32 1, %s20
    $region7: #{tpu_custom_call.1} parent=1 // loop_footer_branch
      %19 = sbr.rel target = $region3
    $region8: #{tpu_custom_call.1} parent=1 // loop_exit
      _
    %1783 = vsyncpa [#allocation4], 1
    %s1784 = scalar_lea.sflag [#allocation4], 1
    %1785 = vsyncpa %s1784, 1

</llo_original>
